<compile_context>
chip_gen: v6e
topology: v6e:2x2x1
jax: 0.10.0
libtpu: 0.0.40
codegen_flags: <defaults>
</compile_context>

<pallas_src>
import functools

import jax
import jax.numpy as jnp
from jax.experimental import pallas as pl
from jax.experimental.pallas import tpu as pltpu


# ------------------------------ Pallas kernel ------------------------------- #

def _group_kernel(x_ref, mask_ref, wa_ref, ba_ref, wb_ref, bb_ref,
                  cw1_ref, cb1_ref, cw2_ref, cb2_ref,
                  out_ref, act_ref, pad_ref, *, W):
    """One grid step = one RCAB (j < last) or the tail conv (j == last)."""
    C, HW = act_ref.shape
    M = W + 1                                  # halo width on the flat spatial axis
    j = pl.program_id(1)
    last = pl.num_programs(1) - 1

    @pl.when(j == 0)
    def _init():
        # Zero the halo buffer once per image (its border is never rewritten),
        # and load the group input into the persistent activation scratch.
        pad_ref[...] = jnp.zeros_like(pad_ref)
        act_ref[...] = x_ref[...].astype(jnp.float32)

    def conv3x3(src, w_ref, b_ref):
        # im2col conv: store src into the interior of the halo buffer, read the
        # 9 lane-shifted taps, mask out-of-image positions, concatenate to a
        # (9C, HW) window and do ONE MXU matmul with the (C, 9C) weight.
        pad_ref[:, M:M + HW] = src
        taps = []
        for kh in range(3):
            for kw in range(3):
                t = kh * 3 + kw
                d = (kh - 1) * W + (kw - 1)
                if d == 0:
                    taps.append(src)                       # center tap, no mask
                else:
                    taps.append(pad_ref[:, M + d:M + d + HW] * mask_ref[t:t + 1, :])
        win = jnp.concatenate(taps, axis=0)                # (9C, HW)
        out = jnp.dot(w_ref[...], win, preferred_element_type=jnp.float32)
        return out + b_ref[...]                            # (C, HW) + (C, 1)

    @pl.when(j < last)
    def _rcab():
        x = act_ref[...]                                   # (C, HW)
        h1 = jnp.maximum(conv3x3(x, wa_ref, ba_ref), 0.0)  # conv -> ReLU
        res = conv3x3(h1, wb_ref, bb_ref)                  # conv
        # Channel attention: global avg pool -> 1x1 -> ReLU -> 1x1 -> sigmoid.
        pooled = jnp.mean(res, axis=1, keepdims=True)      # (C, 1)
        y1 = jnp.maximum(
            jnp.sum(cw1_ref[...] * pooled, axis=0, keepdims=True) + cb1_ref[...],
            0.0)                                           # (1, Cr)
        y2 = jax.nn.sigmoid(
            jnp.sum(cw2_ref[...] * y1, axis=1, keepdims=True) + cb2_ref[...])  # (C, 1)
        act_ref[...] = res * y2 + x                        # RCAB residual

    @pl.when(j == last)
    def _tail():
        res = conv3x3(act_ref[...], wa_ref, ba_ref)        # trailing group conv
        out_ref[...] = (res + x_ref[...].astype(jnp.float32)).astype(out_ref.dtype)


# --------------------------------- wrapper ----------------------------------- #

def _make_tap_masks(H, W):
    """(9, H*W) f32 masks: 1.0 where the shifted tap stays inside the image."""
    hh, ww = jnp.meshgrid(jnp.arange(H), jnp.arange(W), indexing="ij")
    masks = []
    for kh in range(3):
        for kw in range(3):
            dh, dw = kh - 1, kw - 1
            m = ((hh + dh >= 0) & (hh + dh < H) & (ww + dw >= 0) & (ww + dw < W))
            masks.append(m.reshape(-1))
    return jnp.stack(masks).astype(jnp.float32)


def pack_params(params):
    """Stack per-block weights along a leading 'step' axis in kernel layout."""
    blocks = params["blocks"]
    C = params["tail_w"].shape[0]
    Cr = blocks[0]["ca_w1"].shape[0] if blocks else 1

    def conv_mat(w):   # (Cout, Cin, 3, 3) -> (Cout, 9*Cin), tap-major (kh, kw, ci)
        return jnp.transpose(w, (0, 2, 3, 1)).reshape(C, 9 * C)

    zw = jnp.zeros((C, 9 * C), jnp.float32)
    zc = jnp.zeros((C, 1), jnp.float32)
    zr = jnp.zeros((C, Cr), jnp.float32)
    zb = jnp.zeros((1, Cr), jnp.float32)

    wa = jnp.stack([conv_mat(b["w1"]) for b in blocks] + [conv_mat(params["tail_w"])])
    ba = jnp.stack([b["b1"].reshape(C, 1) for b in blocks]
                   + [params["tail_b"].reshape(C, 1)])
    wb = jnp.stack([conv_mat(b["w2"]) for b in blocks] + [zw])
    bb = jnp.stack([b["b2"].reshape(C, 1) for b in blocks] + [zc])
    cw1 = jnp.stack([b["ca_w1"].T for b in blocks] + [zr])          # (S, C, Cr)
    cb1 = jnp.stack([b["ca_b1"].reshape(1, Cr) for b in blocks] + [zb])
    cw2 = jnp.stack([b["ca_w2"] for b in blocks] + [zr])            # (S, C, Cr)
    cb2 = jnp.stack([b["ca_b2"].reshape(C, 1) for b in blocks] + [zc])
    return dict(wa=wa, ba=ba, wb=wb, bb=bb, cw1=cw1, cb1=cb1, cw2=cw2, cb2=cb2)


def residual_group_forward(x_nchw, params):
    N, C, H, W = x_nchw.shape
    HW = H * W
    packed = pack_params(params)
    S, _, Cr = packed["cw1"].shape                 # S = n_resblocks + 1 (tail)
    masks = _make_tap_masks(H, W)
    x_flat = x_nchw.reshape(N, C, HW)

    idx_b = lambda b, j: (b, 0, 0)                 # per-batch block, resident over j
    idx_s = lambda b, j: (j, 0, 0)                 # per-step weights
    idx_full = lambda b, j: (0, 0)                 # fully-resident constants

    n_blocks = len(params["blocks"])
    flops = N * (2 * n_blocks + 1) * 2 * C * (9 * C) * HW
    cost = pl.CostEstimate(
        flops=int(flops),
        transcendentals=int(N * n_blocks * C),
        bytes_accessed=int(4 * (2 * N * C * HW + N * S * 2 * C * 9 * C)))

    out_flat = pl.pallas_call(
        functools.partial(_group_kernel, W=W),
        out_shape=jax.ShapeDtypeStruct((N, C, HW), x_nchw.dtype),
        grid_spec=pltpu.PrefetchScalarGridSpec(
            num_scalar_prefetch=0,
            grid=(N, S),
            in_specs=[
                pl.BlockSpec((None, C, HW), idx_b),        # x (group input)
                pl.BlockSpec((9, HW), idx_full),           # tap validity masks
                pl.BlockSpec((None, C, 9 * C), idx_s),     # conv A weight
                pl.BlockSpec((None, C, 1), idx_s),         # conv A bias
                pl.BlockSpec((None, C, 9 * C), idx_s),     # conv B weight
                pl.BlockSpec((None, C, 1), idx_s),         # conv B bias
                pl.BlockSpec((None, C, Cr), idx_s),        # CA w1 (transposed)
                pl.BlockSpec((None, 1, Cr), idx_s),        # CA b1
                pl.BlockSpec((None, C, Cr), idx_s),        # CA w2
                pl.BlockSpec((None, C, 1), idx_s),         # CA b2
            ],
            out_specs=pl.BlockSpec((None, C, HW), idx_b),
            scratch_shapes=[
                pltpu.VMEM((C, HW), jnp.float32),              # running activation
                pltpu.VMEM((C, HW + 2 * (W + 1)), jnp.float32)  # flat halo buffer
            ]),
        compiler_params=pltpu.CompilerParams(
            dimension_semantics=("parallel", "arbitrary")),
        cost_estimate=cost,
    )(x_flat, masks, packed["wa"], packed["ba"], packed["wb"], packed["bb"],
      packed["cw1"], packed["cb1"], packed["cw2"], packed["cb2"])
    return out_flat.reshape(N, C, H, W)


# --------------------------- params / reference ------------------------------ #

def init_params(key, n_feat, reduction, n_resblocks):
    C = n_feat
    Cr = max(1, n_feat // reduction)

    def nrm(k, shape):
        return 0.1 * jax.random.normal(k, shape, jnp.float32)

    blocks = []
    for _ in range(n_resblocks):
        key, *ks = jax.random.split(key, 9)
        blocks.append(dict(
            w1=nrm(ks[0], (C, C, 3, 3)), b1=nrm(ks[1], (C,)),
            w2=nrm(ks[2], (C, C, 3, 3)), b2=nrm(ks[3], (C,)),
            ca_w1=nrm(ks[4], (Cr, C)), ca_b1=nrm(ks[5], (Cr,)),
            ca_w2=nrm(ks[6], (C, Cr)), ca_b2=nrm(ks[7], (C,))))
    key, k1, k2 = jax.random.split(key, 3)
    return dict(blocks=blocks, tail_w=nrm(k1, (C, C, 3, 3)), tail_b=nrm(k2, (C,)))


def _conv3x3_ref(x, w, b):
    y = jax.lax.conv_general_dilated(
        x, w, window_strides=(1, 1), padding="SAME",
        dimension_numbers=("NCHW", "OIHW", "NCHW"))
    return y + b.reshape(1, -1, 1, 1)


def residual_group_ref(x, params):
    h = x
    for blk in params["blocks"]:
        t = jax.nn.relu(_conv3x3_ref(h, blk["w1"], blk["b1"]))
        res = _conv3x3_ref(t, blk["w2"], blk["b2"])
        pooled = jnp.mean(res, axis=(2, 3))                                # (N, C)
        y1 = jax.nn.relu(pooled @ blk["ca_w1"].T + blk["ca_b1"])           # (N, Cr)
        y2 = jax.nn.sigmoid(y1 @ blk["ca_w2"].T + blk["ca_b2"])            # (N, C)
        h = res * y2[:, :, None, None] + h
    return _conv3x3_ref(h, params["tail_w"], params["tail_b"]) + x


# ----------------------------------- main ------------------------------------ #

if __name__ == "__main__":
    N, C, H, W = 2, 8, 16, 16          # NCHW, matches the PyTorch module layout
    reduction = 4
    n_resblocks = 2

    key = jax.random.PRNGKey(0)
    key, kx, kp = jax.random.split(key, 3)
    x = jax.random.normal(kx, (N, C, H, W), jnp.float32)
    params = init_params(kp, C, reduction, n_resblocks)

    out = residual_group_forward(x, params)
    out = jax.block_until_ready(out)

    ref = residual_group_ref(x, params)
    assert out.shape == (N, C, H, W)
    err = float(jnp.max(jnp.abs(out - ref)))
    assert jnp.allclose(out, ref, atol=2e-3, rtol=2e-3), "max abs err %e" % err

    print("KERNEL_OK")
</pallas_src>

<mosaic_0001>
module attributes {stable_mosaic.version = 11 : i64} {
  func.func @_group_kernel(%arg0: i32, %arg1: i32, %arg2: memref<1x8x256xf32, #tpu.memory_space<vmem>>, %arg3: memref<9x256xf32, #tpu.memory_space<vmem>>, %arg4: memref<1x8x72xf32, #tpu.memory_space<vmem>>, %arg5: memref<1x8x1xf32, #tpu.memory_space<vmem>>, %arg6: memref<1x8x72xf32, #tpu.memory_space<vmem>>, %arg7: memref<1x8x1xf32, #tpu.memory_space<vmem>>, %arg8: memref<1x8x2xf32, #tpu.memory_space<vmem>>, %arg9: memref<1x1x2xf32, #tpu.memory_space<vmem>>, %arg10: memref<1x8x2xf32, #tpu.memory_space<vmem>>, %arg11: memref<1x8x1xf32, #tpu.memory_space<vmem>>, %arg12: memref<1x8x256xf32, #tpu.memory_space<vmem>>, %arg13: memref<8x256xf32, #tpu.memory_space<vmem>>, %arg14: memref<8x290xf32, #tpu.memory_space<vmem>>) attributes {dimension_semantics = [#tpu.dimension_semantics<parallel>, #tpu.dimension_semantics<arbitrary>], iteration_bounds = array<i64: 2, 3>, scalar_prefetch = 0 : i64, scratch_operands = 2 : i64, tpu.core_type = #tpu.core_type<tc>, window_params = [{transform_indices = @transform_0, window_bounds = array<i64: 1, 8, 256>}, {pipeline_mode = #tpu.pipeline_mode<synchronous>, transform_indices = @transform_1, window_bounds = array<i64: 9, 256>}, {transform_indices = @transform_2, window_bounds = array<i64: 1, 8, 72>}, {transform_indices = @transform_3, window_bounds = array<i64: 1, 8, 1>}, {transform_indices = @transform_4, window_bounds = array<i64: 1, 8, 72>}, {transform_indices = @transform_5, window_bounds = array<i64: 1, 8, 1>}, {transform_indices = @transform_6, window_bounds = array<i64: 1, 8, 2>}, {transform_indices = @transform_7, window_bounds = array<i64: 1, 1, 2>}, {transform_indices = @transform_8, window_bounds = array<i64: 1, 8, 2>}, {transform_indices = @transform_9, window_bounds = array<i64: 1, 8, 1>}, {transform_indices = @transform_10, window_bounds = array<i64: 1, 8, 256>}]} {
    %c0_i32 = arith.constant 0 : i32
    %0 = arith.cmpi eq, %arg1, %c0_i32 : i32
    %1 = arith.extui %0 : i1 to i32
    %c0_i32_0 = arith.constant 0 : i32
    %2 = arith.cmpi ne, %1, %c0_i32_0 : i32
    scf.if %2 {
      %cst = arith.constant 0.000000e+00 : f32
      %9 = vector.broadcast %cst : f32 to vector<8x290xf32>
      %c0 = arith.constant 0 : index
      %c0_4 = arith.constant 0 : index
      %10 = vector.load %arg14[%c0, %c0_4] : memref<8x290xf32, #tpu.memory_space<vmem>>, vector<8x290xf32>
      tpu.vector_store %arg14[%c0, %c0_4], %9 {strides = array<i32>} : memref<8x290xf32, #tpu.memory_space<vmem>>, vector<8x290xf32>,
      %c0_5 = arith.constant 0 : index
      %c0_6 = arith.constant 0 : index
      %c0_7 = arith.constant 0 : index
      %11 = vector.load %arg2[%c0_5, %c0_6, %c0_7] : memref<1x8x256xf32, #tpu.memory_space<vmem>>, vector<1x8x256xf32>
      %12 = vector.shape_cast %11 : vector<1x8x256xf32> to vector<8x256xf32>
      %c0_8 = arith.constant 0 : index
      %c0_9 = arith.constant 0 : index
      %13 = vector.load %arg13[%c0_8, %c0_9] : memref<8x256xf32, #tpu.memory_space<vmem>>, vector<8x256xf32>
      tpu.vector_store %arg13[%c0_8, %c0_9], %12 {strides = array<i32>} : memref<8x256xf32, #tpu.memory_space<vmem>>, vector<8x256xf32>,
    } else {
    }
    %c2_i32 = arith.constant 2 : i32
    %3 = arith.cmpi slt, %arg1, %c2_i32 : i32
    %4 = arith.extui %3 : i1 to i32
    %c0_i32_1 = arith.constant 0 : i32
    %5 = arith.cmpi ne, %4, %c0_i32_1 : i32
    scf.if %5 {
      %c0 = arith.constant 0 : index
      %c0_4 = arith.constant 0 : index
      %9 = vector.load %arg13[%c0, %c0_4] : memref<8x256xf32, #tpu.memory_space<vmem>>, vector<8x256xf32>
      %c0_5 = arith.constant 0 : index
      %c17 = arith.constant 17 : index
      %10 = vector.load %arg14[%c0_5, %c17] : memref<8x290xf32, #tpu.memory_space<vmem>>, vector<8x256xf32>
      tpu.vector_store %arg14[%c0_5, %c17], %9 {strides = array<i32>} : memref<8x290xf32, #tpu.memory_space<vmem>>, vector<8x256xf32>,
      %c0_6 = arith.constant 0 : index
      %c0_7 = arith.constant 0 : index
      %11 = vector.load %arg14[%c0_6, %c0_7] : memref<8x290xf32, #tpu.memory_space<vmem>>, vector<8x256xf32>
      %c0_8 = arith.constant 0 : index
      %c0_9 = arith.constant 0 : index
      %12 = vector.load %arg3[%c0_8, %c0_9] : memref<9x256xf32, #tpu.memory_space<vmem>>, vector<1x256xf32>
      %13 = vector.broadcast %12 : vector<1x256xf32> to vector<8x256xf32>
      %14 = arith.mulf %11, %13 : vector<8x256xf32>
      %c0_10 = arith.constant 0 : index
      %c1 = arith.constant 1 : index
      %15 = vector.load %arg14[%c0_10, %c1] : memref<8x290xf32, #tpu.memory_space<vmem>>, vector<8x256xf32>
      %c1_11 = arith.constant 1 : index
      %c0_12 = arith.constant 0 : index
      %16 = vector.load %arg3[%c1_11, %c0_12] : memref<9x256xf32, #tpu.memory_space<vmem>>, vector<1x256xf32>
      %17 = vector.broadcast %16 : vector<1x256xf32> to vector<8x256xf32>
      %18 = arith.mulf %15, %17 : vector<8x256xf32>
      %c0_13 = arith.constant 0 : index
      %c2 = arith.constant 2 : index
      %19 = vector.load %arg14[%c0_13, %c2] : memref<8x290xf32, #tpu.memory_space<vmem>>, vector<8x256xf32>
      %c2_14 = arith.constant 2 : index
      %c0_15 = arith.constant 0 : index
      %20 = vector.load %arg3[%c2_14, %c0_15] : memref<9x256xf32, #tpu.memory_space<vmem>>, vector<1x256xf32>
      %21 = vector.broadcast %20 : vector<1x256xf32> to vector<8x256xf32>
      %22 = arith.mulf %19, %21 : vector<8x256xf32>
      %c0_16 = arith.constant 0 : index
      %c16 = arith.constant 16 : index
      %23 = vector.load %arg14[%c0_16, %c16] : memref<8x290xf32, #tpu.memory_space<vmem>>, vector<8x256xf32>
      %c3 = arith.constant 3 : index
      %c0_17 = arith.constant 0 : index
      %24 = vector.load %arg3[%c3, %c0_17] : memref<9x256xf32, #tpu.memory_space<vmem>>, vector<1x256xf32>
      %25 = vector.broadcast %24 : vector<1x256xf32> to vector<8x256xf32>
      %26 = arith.mulf %23, %25 : vector<8x256xf32>
      %c0_18 = arith.constant 0 : index
      %c18 = arith.constant 18 : index
      %27 = vector.load %arg14[%c0_18, %c18] : memref<8x290xf32, #tpu.memory_space<vmem>>, vector<8x256xf32>
      %c5 = arith.constant 5 : index
      %c0_19 = arith.constant 0 : index
      %28 = vector.load %arg3[%c5, %c0_19] : memref<9x256xf32, #tpu.memory_space<vmem>>, vector<1x256xf32>
      %29 = vector.broadcast %28 : vector<1x256xf32> to vector<8x256xf32>
      %30 = arith.mulf %27, %29 : vector<8x256xf32>
      %c0_20 = arith.constant 0 : index
      %c32 = arith.constant 32 : index
      %31 = vector.load %arg14[%c0_20, %c32] : memref<8x290xf32, #tpu.memory_space<vmem>>, vector<8x256xf32>
      %c6 = arith.constant 6 : index
      %c0_21 = arith.constant 0 : index
      %32 = vector.load %arg3[%c6, %c0_21] : memref<9x256xf32, #tpu.memory_space<vmem>>, vector<1x256xf32>
      %33 = vector.broadcast %32 : vector<1x256xf32> to vector<8x256xf32>
      %34 = arith.mulf %31, %33 : vector<8x256xf32>
      %c0_22 = arith.constant 0 : index
      %c33 = arith.constant 33 : index
      %35 = vector.load %arg14[%c0_22, %c33] : memref<8x290xf32, #tpu.memory_space<vmem>>, vector<8x256xf32>
      %c7 = arith.constant 7 : index
      %c0_23 = arith.constant 0 : index
      %36 = vector.load %arg3[%c7, %c0_23] : memref<9x256xf32, #tpu.memory_space<vmem>>, vector<1x256xf32>
      %37 = vector.broadcast %36 : vector<1x256xf32> to vector<8x256xf32>
      %38 = arith.mulf %35, %37 : vector<8x256xf32>
      %c0_24 = arith.constant 0 : index
      %c34 = arith.constant 34 : index
      %39 = vector.load %arg14[%c0_24, %c34] : memref<8x290xf32, #tpu.memory_space<vmem>>, vector<8x256xf32>
      %c8 = arith.constant 8 : index
      %c0_25 = arith.constant 0 : index
      %40 = vector.load %arg3[%c8, %c0_25] : memref<9x256xf32, #tpu.memory_space<vmem>>, vector<1x256xf32>
      %41 = vector.broadcast %40 : vector<1x256xf32> to vector<8x256xf32>
      %42 = arith.mulf %39, %41 : vector<8x256xf32>
      %43 = tpu.concatenate %14, %18, %22, %26, %9, %30, %34, %38, %42 in 0 : vector<8x256xf32>, vector<8x256xf32>, vector<8x256xf32>, vector<8x256xf32>, vector<8x256xf32>, vector<8x256xf32>, vector<8x256xf32>, vector<8x256xf32>, vector<8x256xf32> -> vector<72x256xf32>
      %c0_26 = arith.constant 0 : index
      %c0_27 = arith.constant 0 : index
      %c0_28 = arith.constant 0 : index
      %44 = vector.load %arg4[%c0_26, %c0_27, %c0_28] : memref<1x8x72xf32, #tpu.memory_space<vmem>>, vector<1x8x72xf32>
      %45 = vector.shape_cast %44 : vector<1x8x72xf32> to vector<8x72xf32>
      %cst = arith.constant dense<0.000000e+00> : vector<8x256xf32>
      %46 = tpu.matmul %45, %43, %cst {dimension_numbers = #tpu.dot_dimension_numbers<[1], [0], [0], [1], [0, 0, 1, 1], [], []>} : vector<8x72xf32>, vector<72x256xf32>, vector<8x256xf32> -> vector<8x256xf32>
      %c0_29 = arith.constant 0 : index
      %c0_30 = arith.constant 0 : index
      %c0_31 = arith.constant 0 : index
      %47 = vector.load %arg5[%c0_29, %c0_30, %c0_31] : memref<1x8x1xf32, #tpu.memory_space<vmem>>, vector<1x8x1xf32>
      %48 = vector.shape_cast %47 : vector<1x8x1xf32> to vector<8x1xf32>
      %49 = vector.broadcast %48 : vector<8x1xf32> to vector<8x256xf32>
      %50 = arith.addf %46, %49 : vector<8x256xf32>
      %cst_32 = arith.constant 0.000000e+00 : f32
      %51 = vector.broadcast %cst_32 : f32 to vector<8x256xf32>
      %52 = arith.maximumf %50, %51 : vector<8x256xf32>
      %c0_33 = arith.constant 0 : index
      %c17_34 = arith.constant 17 : index
      %53 = vector.load %arg14[%c0_33, %c17_34] : memref<8x290xf32, #tpu.memory_space<vmem>>, vector<8x256xf32>
      tpu.vector_store %arg14[%c0_33, %c17_34], %52 {strides = array<i32>} : memref<8x290xf32, #tpu.memory_space<vmem>>, vector<8x256xf32>,
      %c0_35 = arith.constant 0 : index
      %c0_36 = arith.constant 0 : index
      %54 = vector.load %arg14[%c0_35, %c0_36] : memref<8x290xf32, #tpu.memory_space<vmem>>, vector<8x256xf32>
      %c0_37 = arith.constant 0 : index
      %c0_38 = arith.constant 0 : index
      %55 = vector.load %arg3[%c0_37, %c0_38] : memref<9x256xf32, #tpu.memory_space<vmem>>, vector<1x256xf32>
      %56 = vector.broadcast %55 : vector<1x256xf32> to vector<8x256xf32>
      %57 = arith.mulf %54, %56 : vector<8x256xf32>
      %c0_39 = arith.constant 0 : index
      %c1_40 = arith.constant 1 : index
      %58 = vector.load %arg14[%c0_39, %c1_40] : memref<8x290xf32, #tpu.memory_space<vmem>>, vector<8x256xf32>
      %c1_41 = arith.constant 1 : index
      %c0_42 = arith.constant 0 : index
      %59 = vector.load %arg3[%c1_41, %c0_42] : memref<9x256xf32, #tpu.memory_space<vmem>>, vector<1x256xf32>
      %60 = vector.broadcast %59 : vector<1x256xf32> to vector<8x256xf32>
      %61 = arith.mulf %58, %60 : vector<8x256xf32>
      %c0_43 = arith.constant 0 : index
      %c2_44 = arith.constant 2 : index
      %62 = vector.load %arg14[%c0_43, %c2_44] : memref<8x290xf32, #tpu.memory_space<vmem>>, vector<8x256xf32>
      %c2_45 = arith.constant 2 : index
      %c0_46 = arith.constant 0 : index
      %63 = vector.load %arg3[%c2_45, %c0_46] : memref<9x256xf32, #tpu.memory_space<vmem>>, vector<1x256xf32>
      %64 = vector.broadcast %63 : vector<1x256xf32> to vector<8x256xf32>
      %65 = arith.mulf %62, %64 : vector<8x256xf32>
      %c0_47 = arith.constant 0 : index
      %c16_48 = arith.constant 16 : index
      %66 = vector.load %arg14[%c0_47, %c16_48] : memref<8x290xf32, #tpu.memory_space<vmem>>, vector<8x256xf32>
      %c3_49 = arith.constant 3 : index
      %c0_50 = arith.constant 0 : index
      %67 = vector.load %arg3[%c3_49, %c0_50] : memref<9x256xf32, #tpu.memory_space<vmem>>, vector<1x256xf32>
      %68 = vector.broadcast %67 : vector<1x256xf32> to vector<8x256xf32>
      %69 = arith.mulf %66, %68 : vector<8x256xf32>
      %c0_51 = arith.constant 0 : index
      %c18_52 = arith.constant 18 : index
      %70 = vector.load %arg14[%c0_51, %c18_52] : memref<8x290xf32, #tpu.memory_space<vmem>>, vector<8x256xf32>
      %c5_53 = arith.constant 5 : index
      %c0_54 = arith.constant 0 : index
      %71 = vector.load %arg3[%c5_53, %c0_54] : memref<9x256xf32, #tpu.memory_space<vmem>>, vector<1x256xf32>
      %72 = vector.broadcast %71 : vector<1x256xf32> to vector<8x256xf32>
      %73 = arith.mulf %70, %72 : vector<8x256xf32>
      %c0_55 = arith.constant 0 : index
      %c32_56 = arith.constant 32 : index
      %74 = vector.load %arg14[%c0_55, %c32_56] : memref<8x290xf32, #tpu.memory_space<vmem>>, vector<8x256xf32>
      %c6_57 = arith.constant 6 : index
      %c0_58 = arith.constant 0 : index
      %75 = vector.load %arg3[%c6_57, %c0_58] : memref<9x256xf32, #tpu.memory_space<vmem>>, vector<1x256xf32>
      %76 = vector.broadcast %75 : vector<1x256xf32> to vector<8x256xf32>
      %77 = arith.mulf %74, %76 : vector<8x256xf32>
      %c0_59 = arith.constant 0 : index
      %c33_60 = arith.constant 33 : index
      %78 = vector.load %arg14[%c0_59, %c33_60] : memref<8x290xf32, #tpu.memory_space<vmem>>, vector<8x256xf32>
      %c7_61 = arith.constant 7 : index
      %c0_62 = arith.constant 0 : index
      %79 = vector.load %arg3[%c7_61, %c0_62] : memref<9x256xf32, #tpu.memory_space<vmem>>, vector<1x256xf32>
      %80 = vector.broadcast %79 : vector<1x256xf32> to vector<8x256xf32>
      %81 = arith.mulf %78, %80 : vector<8x256xf32>
      %c0_63 = arith.constant 0 : index
      %c34_64 = arith.constant 34 : index
      %82 = vector.load %arg14[%c0_63, %c34_64] : memref<8x290xf32, #tpu.memory_space<vmem>>, vector<8x256xf32>
      %c8_65 = arith.constant 8 : index
      %c0_66 = arith.constant 0 : index
      %83 = vector.load %arg3[%c8_65, %c0_66] : memref<9x256xf32, #tpu.memory_space<vmem>>, vector<1x256xf32>
      %84 = vector.broadcast %83 : vector<1x256xf32> to vector<8x256xf32>
      %85 = arith.mulf %82, %84 : vector<8x256xf32>
      %86 = tpu.concatenate %57, %61, %65, %69, %52, %73, %77, %81, %85 in 0 : vector<8x256xf32>, vector<8x256xf32>, vector<8x256xf32>, vector<8x256xf32>, vector<8x256xf32>, vector<8x256xf32>, vector<8x256xf32>, vector<8x256xf32>, vector<8x256xf32> -> vector<72x256xf32>
      %c0_67 = arith.constant 0 : index
      %c0_68 = arith.constant 0 : index
      %c0_69 = arith.constant 0 : index
      %87 = vector.load %arg6[%c0_67, %c0_68, %c0_69] : memref<1x8x72xf32, #tpu.memory_space<vmem>>, vector<1x8x72xf32>
      %88 = vector.shape_cast %87 : vector<1x8x72xf32> to vector<8x72xf32>
      %cst_70 = arith.constant dense<0.000000e+00> : vector<8x256xf32>
      %89 = tpu.matmul %88, %86, %cst_70 {dimension_numbers = #tpu.dot_dimension_numbers<[1], [0], [0], [1], [0, 0, 1, 1], [], []>} : vector<8x72xf32>, vector<72x256xf32>, vector<8x256xf32> -> vector<8x256xf32>
      %c0_71 = arith.constant 0 : index
      %c0_72 = arith.constant 0 : index
      %c0_73 = arith.constant 0 : index
      %90 = vector.load %arg7[%c0_71, %c0_72, %c0_73] : memref<1x8x1xf32, #tpu.memory_space<vmem>>, vector<1x8x1xf32>
      %91 = vector.shape_cast %90 : vector<1x8x1xf32> to vector<8x1xf32>
      %92 = vector.broadcast %91 : vector<8x1xf32> to vector<8x256xf32>
      %93 = arith.addf %89, %92 : vector<8x256xf32>
      %cst_74 = arith.constant dense<0.000000e+00> : vector<8xf32>
      %94 = vector.multi_reduction <add>, %93, %cst_74 [1] : vector<8x256xf32> to vector<8xf32>
      %95 = vector.shape_cast %94 : vector<8xf32> to vector<8x1xf32>
      %cst_75 = arith.constant 2.560000e+02 : f32
      %96 = vector.broadcast %cst_75 : f32 to vector<8x1xf32>
      %97 = arith.divf %95, %96 : vector<8x1xf32>
      %c0_76 = arith.constant 0 : index
      %c0_77 = arith.constant 0 : index
      %c0_78 = arith.constant 0 : index
      %98 = vector.load %arg8[%c0_76, %c0_77, %c0_78] : memref<1x8x2xf32, #tpu.memory_space<vmem>>, vector<1x8x2xf32>
      %99 = vector.shape_cast %98 : vector<1x8x2xf32> to vector<8x2xf32>
      %100 = vector.broadcast %97 : vector<8x1xf32> to vector<8x2xf32>
      %101 = arith.mulf %99, %100 : vector<8x2xf32>
      %cst_79 = arith.constant dense<0.000000e+00> : vector<2xf32>
      %102 = vector.multi_reduction <add>, %101, %cst_79 [0] : vector<8x2xf32> to vector<2xf32>
      %103 = vector.shape_cast %102 : vector<2xf32> to vector<1x2xf32>
      %c0_80 = arith.constant 0 : index
      %c0_81 = arith.constant 0 : index
      %c0_82 = arith.constant 0 : index
      %104 = vector.load %arg9[%c0_80, %c0_81, %c0_82] : memref<1x1x2xf32, #tpu.memory_space<vmem>>, vector<1x1x2xf32>
      %105 = vector.shape_cast %104 : vector<1x1x2xf32> to vector<1x2xf32>
      %106 = arith.addf %103, %105 : vector<1x2xf32>
      %cst_83 = arith.constant 0.000000e+00 : f32
      %107 = vector.broadcast %cst_83 : f32 to vector<1x2xf32>
      %108 = arith.maximumf %106, %107 : vector<1x2xf32>
      %c0_84 = arith.constant 0 : index
      %c0_85 = arith.constant 0 : index
      %c0_86 = arith.constant 0 : index
      %109 = vector.load %arg10[%c0_84, %c0_85, %c0_86] : memref<1x8x2xf32, #tpu.memory_space<vmem>>, vector<1x8x2xf32>
      %110 = vector.shape_cast %109 : vector<1x8x2xf32> to vector<8x2xf32>
      %111 = vector.broadcast %108 : vector<1x2xf32> to vector<8x2xf32>
      %112 = arith.mulf %110, %111 : vector<8x2xf32>
      %cst_87 = arith.constant dense<0.000000e+00> : vector<8xf32>
      %113 = vector.multi_reduction <add>, %112, %cst_87 [1] : vector<8x2xf32> to vector<8xf32>
      %114 = vector.shape_cast %113 : vector<8xf32> to vector<8x1xf32>
      %c0_88 = arith.constant 0 : index
      %c0_89 = arith.constant 0 : index
      %c0_90 = arith.constant 0 : index
      %115 = vector.load %arg11[%c0_88, %c0_89, %c0_90] : memref<1x8x1xf32, #tpu.memory_space<vmem>>, vector<1x8x1xf32>
      %116 = vector.shape_cast %115 : vector<1x8x1xf32> to vector<8x1xf32>
      %117 = arith.addf %114, %116 : vector<8x1xf32>
      %118 = arith.negf %117 : vector<8x1xf32>
      %119 = math.exp %118 : vector<8x1xf32>
      %cst_91 = arith.constant 1.000000e+00 : f32
      %120 = vector.broadcast %cst_91 : f32 to vector<8x1xf32>
      %121 = arith.addf %120, %119 : vector<8x1xf32>
      %122 = arith.divf %120, %121 : vector<8x1xf32>
      %123 = vector.broadcast %122 : vector<8x1xf32> to vector<8x256xf32>
      %124 = arith.mulf %93, %123 : vector<8x256xf32>
      %125 = arith.addf %124, %9 : vector<8x256xf32>
      %c0_92 = arith.constant 0 : index
      %c0_93 = arith.constant 0 : index
      %126 = vector.load %arg13[%c0_92, %c0_93] : memref<8x256xf32, #tpu.memory_space<vmem>>, vector<8x256xf32>
      tpu.vector_store %arg13[%c0_92, %c0_93], %125 {strides = array<i32>} : memref<8x256xf32, #tpu.memory_space<vmem>>, vector<8x256xf32>,
    } else {
    }
    %c2_i32_2 = arith.constant 2 : i32
    %6 = arith.cmpi eq, %arg1, %c2_i32_2 : i32
    %7 = arith.extui %6 : i1 to i32
    %c0_i32_3 = arith.constant 0 : i32
    %8 = arith.cmpi ne, %7, %c0_i32_3 : i32
    scf.if %8 {
      %c0 = arith.constant 0 : index
      %c0_4 = arith.constant 0 : index
      %9 = vector.load %arg13[%c0, %c0_4] : memref<8x256xf32, #tpu.memory_space<vmem>>, vector<8x256xf32>
      %c0_5 = arith.constant 0 : index
      %c17 = arith.constant 17 : index
      %10 = vector.load %arg14[%c0_5, %c17] : memref<8x290xf32, #tpu.memory_space<vmem>>, vector<8x256xf32>
      tpu.vector_store %arg14[%c0_5, %c17], %9 {strides = array<i32>} : memref<8x290xf32, #tpu.memory_space<vmem>>, vector<8x256xf32>,
      %c0_6 = arith.constant 0 : index
      %c0_7 = arith.constant 0 : index
      %11 = vector.load %arg14[%c0_6, %c0_7] : memref<8x290xf32, #tpu.memory_space<vmem>>, vector<8x256xf32>
      %c0_8 = arith.constant 0 : index
      %c0_9 = arith.constant 0 : index
      %12 = vector.load %arg3[%c0_8, %c0_9] : memref<9x256xf32, #tpu.memory_space<vmem>>, vector<1x256xf32>
      %13 = vector.broadcast %12 : vector<1x256xf32> to vector<8x256xf32>
      %14 = arith.mulf %11, %13 : vector<8x256xf32>
      %c0_10 = arith.constant 0 : index
      %c1 = arith.constant 1 : index
      %15 = vector.load %arg14[%c0_10, %c1] : memref<8x290xf32, #tpu.memory_space<vmem>>, vector<8x256xf32>
      %c1_11 = arith.constant 1 : index
      %c0_12 = arith.constant 0 : index
      %16 = vector.load %arg3[%c1_11, %c0_12] : memref<9x256xf32, #tpu.memory_space<vmem>>, vector<1x256xf32>
      %17 = vector.broadcast %16 : vector<1x256xf32> to vector<8x256xf32>
      %18 = arith.mulf %15, %17 : vector<8x256xf32>
      %c0_13 = arith.constant 0 : index
      %c2 = arith.constant 2 : index
      %19 = vector.load %arg14[%c0_13, %c2] : memref<8x290xf32, #tpu.memory_space<vmem>>, vector<8x256xf32>
      %c2_14 = arith.constant 2 : index
      %c0_15 = arith.constant 0 : index
      %20 = vector.load %arg3[%c2_14, %c0_15] : memref<9x256xf32, #tpu.memory_space<vmem>>, vector<1x256xf32>
      %21 = vector.broadcast %20 : vector<1x256xf32> to vector<8x256xf32>
      %22 = arith.mulf %19, %21 : vector<8x256xf32>
      %c0_16 = arith.constant 0 : index
      %c16 = arith.constant 16 : index
      %23 = vector.load %arg14[%c0_16, %c16] : memref<8x290xf32, #tpu.memory_space<vmem>>, vector<8x256xf32>
      %c3 = arith.constant 3 : index
      %c0_17 = arith.constant 0 : index
      %24 = vector.load %arg3[%c3, %c0_17] : memref<9x256xf32, #tpu.memory_space<vmem>>, vector<1x256xf32>
      %25 = vector.broadcast %24 : vector<1x256xf32> to vector<8x256xf32>
      %26 = arith.mulf %23, %25 : vector<8x256xf32>
      %c0_18 = arith.constant 0 : index
      %c18 = arith.constant 18 : index
      %27 = vector.load %arg14[%c0_18, %c18] : memref<8x290xf32, #tpu.memory_space<vmem>>, vector<8x256xf32>
      %c5 = arith.constant 5 : index
      %c0_19 = arith.constant 0 : index
      %28 = vector.load %arg3[%c5, %c0_19] : memref<9x256xf32, #tpu.memory_space<vmem>>, vector<1x256xf32>
      %29 = vector.broadcast %28 : vector<1x256xf32> to vector<8x256xf32>
      %30 = arith.mulf %27, %29 : vector<8x256xf32>
      %c0_20 = arith.constant 0 : index
      %c32 = arith.constant 32 : index
      %31 = vector.load %arg14[%c0_20, %c32] : memref<8x290xf32, #tpu.memory_space<vmem>>, vector<8x256xf32>
      %c6 = arith.constant 6 : index
      %c0_21 = arith.constant 0 : index
      %32 = vector.load %arg3[%c6, %c0_21] : memref<9x256xf32, #tpu.memory_space<vmem>>, vector<1x256xf32>
      %33 = vector.broadcast %32 : vector<1x256xf32> to vector<8x256xf32>
      %34 = arith.mulf %31, %33 : vector<8x256xf32>
      %c0_22 = arith.constant 0 : index
      %c33 = arith.constant 33 : index
      %35 = vector.load %arg14[%c0_22, %c33] : memref<8x290xf32, #tpu.memory_space<vmem>>, vector<8x256xf32>
      %c7 = arith.constant 7 : index
      %c0_23 = arith.constant 0 : index
      %36 = vector.load %arg3[%c7, %c0_23] : memref<9x256xf32, #tpu.memory_space<vmem>>, vector<1x256xf32>
      %37 = vector.broadcast %36 : vector<1x256xf32> to vector<8x256xf32>
      %38 = arith.mulf %35, %37 : vector<8x256xf32>
      %c0_24 = arith.constant 0 : index
      %c34 = arith.constant 34 : index
      %39 = vector.load %arg14[%c0_24, %c34] : memref<8x290xf32, #tpu.memory_space<vmem>>, vector<8x256xf32>
      %c8 = arith.constant 8 : index
      %c0_25 = arith.constant 0 : index
      %40 = vector.load %arg3[%c8, %c0_25] : memref<9x256xf32, #tpu.memory_space<vmem>>, vector<1x256xf32>
      %41 = vector.broadcast %40 : vector<1x256xf32> to vector<8x256xf32>
      %42 = arith.mulf %39, %41 : vector<8x256xf32>
      %43 = tpu.concatenate %14, %18, %22, %26, %9, %30, %34, %38, %42 in 0 : vector<8x256xf32>, vector<8x256xf32>, vector<8x256xf32>, vector<8x256xf32>, vector<8x256xf32>, vector<8x256xf32>, vector<8x256xf32>, vector<8x256xf32>, vector<8x256xf32> -> vector<72x256xf32>
      %c0_26 = arith.constant 0 : index
      %c0_27 = arith.constant 0 : index
      %c0_28 = arith.constant 0 : index
      %44 = vector.load %arg4[%c0_26, %c0_27, %c0_28] : memref<1x8x72xf32, #tpu.memory_space<vmem>>, vector<1x8x72xf32>
      %45 = vector.shape_cast %44 : vector<1x8x72xf32> to vector<8x72xf32>
      %cst = arith.constant dense<0.000000e+00> : vector<8x256xf32>
      %46 = tpu.matmul %45, %43, %cst {dimension_numbers = #tpu.dot_dimension_numbers<[1], [0], [0], [1], [0, 0, 1, 1], [], []>} : vector<8x72xf32>, vector<72x256xf32>, vector<8x256xf32> -> vector<8x256xf32>
      %c0_29 = arith.constant 0 : index
      %c0_30 = arith.constant 0 : index
      %c0_31 = arith.constant 0 : index
      %47 = vector.load %arg5[%c0_29, %c0_30, %c0_31] : memref<1x8x1xf32, #tpu.memory_space<vmem>>, vector<1x8x1xf32>
      %48 = vector.shape_cast %47 : vector<1x8x1xf32> to vector<8x1xf32>
      %49 = vector.broadcast %48 : vector<8x1xf32> to vector<8x256xf32>
      %50 = arith.addf %46, %49 : vector<8x256xf32>
      %c0_32 = arith.constant 0 : index
      %c0_33 = arith.constant 0 : index
      %c0_34 = arith.constant 0 : index
      %51 = vector.load %arg2[%c0_32, %c0_33, %c0_34] : memref<1x8x256xf32, #tpu.memory_space<vmem>>, vector<1x8x256xf32>
      %52 = vector.shape_cast %51 : vector<1x8x256xf32> to vector<8x256xf32>
      %53 = arith.addf %50, %52 : vector<8x256xf32>
      %c0_35 = arith.constant 0 : index
      %c0_36 = arith.constant 0 : index
      %c0_37 = arith.constant 0 : index
      %54 = vector.load %arg12[%c0_35, %c0_36, %c0_37] : memref<1x8x256xf32, #tpu.memory_space<vmem>>, vector<1x8x256xf32>
      %55 = vector.shape_cast %54 : vector<1x8x256xf32> to vector<8x256xf32>
      %56 = vector.shape_cast %53 : vector<8x256xf32> to vector<1x8x256xf32>
      tpu.vector_store %arg12[%c0_35, %c0_36, %c0_37], %56 {strides = array<i32>} : memref<1x8x256xf32, #tpu.memory_space<vmem>>, vector<1x8x256xf32>,
    } else {
    }
    return
  }
  func.func @transform_0(%arg0: i32, %arg1: i32) -> (i32, i32, i32) {
    %c0_i32 = arith.constant 0 : i32
    %c0_i32_0 = arith.constant 0 : i32
    %c0_i32_1 = arith.constant 0 : i32
    return %arg0, %c0_i32, %c0_i32_0 : i32, i32, i32
  }
  func.func @transform_1(%arg0: i32, %arg1: i32) -> (i32, i32) {
    %c0_i32 = arith.constant 0 : i32
    %c0_i32_0 = arith.constant 0 : i32
    %c0_i32_1 = arith.constant 0 : i32
    return %c0_i32, %c0_i32_0 : i32, i32
  }
  func.func @transform_2(%arg0: i32, %arg1: i32) -> (i32, i32, i32) {
    %c0_i32 = arith.constant 0 : i32
    %c0_i32_0 = arith.constant 0 : i32
    %c0_i32_1 = arith.constant 0 : i32
    return %arg1, %c0_i32, %c0_i32_0 : i32, i32, i32
  }
  func.func @transform_3(%arg0: i32, %arg1: i32) -> (i32, i32, i32) {
    %c0_i32 = arith.constant 0 : i32
    %c0_i32_0 = arith.constant 0 : i32
    %c0_i32_1 = arith.constant 0 : i32
    return %arg1, %c0_i32, %c0_i32_0 : i32, i32, i32
  }
  func.func @transform_4(%arg0: i32, %arg1: i32) -> (i32, i32, i32) {
    %c0_i32 = arith.constant 0 : i32
    %c0_i32_0 = arith.constant 0 : i32
    %c0_i32_1 = arith.constant 0 : i32
    return %arg1, %c0_i32, %c0_i32_0 : i32, i32, i32
  }
  func.func @transform_5(%arg0: i32, %arg1: i32) -> (i32, i32, i32) {
    %c0_i32 = arith.constant 0 : i32
    %c0_i32_0 = arith.constant 0 : i32
    %c0_i32_1 = arith.constant 0 : i32
    return %arg1, %c0_i32, %c0_i32_0 : i32, i32, i32
  }
  func.func @transform_6(%arg0: i32, %arg1: i32) -> (i32, i32, i32) {
    %c0_i32 = arith.constant 0 : i32
    %c0_i32_0 = arith.constant 0 : i32
    %c0_i32_1 = arith.constant 0 : i32
    return %arg1, %c0_i32, %c0_i32_0 : i32, i32, i32
  }
  func.func @transform_7(%arg0: i32, %arg1: i32) -> (i32, i32, i32) {
    %c0_i32 = arith.constant 0 : i32
    %c0_i32_0 = arith.constant 0 : i32
    %c0_i32_1 = arith.constant 0 : i32
    return %arg1, %c0_i32, %c0_i32_0 : i32, i32, i32
  }
  func.func @transform_8(%arg0: i32, %arg1: i32) -> (i32, i32, i32) {
    %c0_i32 = arith.constant 0 : i32
    %c0_i32_0 = arith.constant 0 : i32
    %c0_i32_1 = arith.constant 0 : i32
    return %arg1, %c0_i32, %c0_i32_0 : i32, i32, i32
  }
  func.func @transform_9(%arg0: i32, %arg1: i32) -> (i32, i32, i32) {
    %c0_i32 = arith.constant 0 : i32
    %c0_i32_0 = arith.constant 0 : i32
    %c0_i32_1 = arith.constant 0 : i32
    return %arg1, %c0_i32, %c0_i32_0 : i32, i32, i32
  }
  func.func @transform_10(%arg0: i32, %arg1: i32) -> (i32, i32, i32) {
    %c0_i32 = arith.constant 0 : i32
    %c0_i32_0 = arith.constant 0 : i32
    %c0_i32_1 = arith.constant 0 : i32
    return %arg0, %c0_i32, %c0_i32_0 : i32, i32, i32
  }
}

</mosaic_0001>

<llo_original>
// kernel: tpu_custom_call.1
$region0: #{tpu_custom_call.1}
  #allocation0 [shape = 'u32[]', space=smem, size = 0x4, offset = 0x4, fixed_abs, tag = 'smem constant byte address 0x4 - core index']
  #allocation1 [shape = 'u32[144,128]{1,0:T(1,128)}', space=vmem, size = 0x12000, scoped, tag = 'internal scratch']
  #allocation2 [shape = 'f32[8,256]{1,0:T(8,128)}', space=vmem, size = 0x2000, scoped, tag = 'scratch operand']
  #allocation3 [shape = 'f32[8,290]{1,0:T(8,128)}', space=vmem, size = 0x3000, scoped, tag = 'scratch operand']
  %s0 = inlined_call_operand.vmem [shape: f32[2,8,256], index: 0, kind: input, shape index: {}]
  %s1 = inlined_call_operand.vmem [shape: f32[9,256], index: 1, kind: input, shape index: {}]
  %s2 = inlined_call_operand.vmem [shape: f32[3,8,72], index: 2, kind: input, shape index: {}]
  %s3 = inlined_call_operand.vmem [shape: f32[3,8,1], index: 3, kind: input, shape index: {}]
  %s4 = inlined_call_operand.vmem [shape: f32[3,8,72], index: 4, kind: input, shape index: {}]
  %s5 = inlined_call_operand.vmem [shape: f32[3,8,1], index: 5, kind: input, shape index: {}]
  %s6 = inlined_call_operand.vmem [shape: f32[3,8,2], index: 6, kind: input, shape index: {}]
  %s7 = inlined_call_operand.vmem [shape: f32[3,1,2], index: 7, kind: input, shape index: {}]
  %s8 = inlined_call_operand.vmem [shape: f32[3,8,2], index: 8, kind: input, shape index: {}]
  %s9 = inlined_call_operand.vmem [shape: f32[3,8,1], index: 9, kind: input, shape index: {}]
  %s10 = inlined_call_operand.hbm [shape: f32[2,8,256], index: 10, kind: output, shape index: {}]
  %s11 = sld [smem:[#allocation0]]
  $region85: #{tpu_custom_call.1} parent=0
    _
  %s13 = ssub.s32 1, %s11
  %s14 = scalar_select 0, %s13, %s11
  $region1: #{tpu_custom_call.1} parent=0
    #allocation4 [shape = 'u8[16384]{0}', space=vmem, size = 0x4000, scoped, tag = 'output window, operand 0']
    #allocation5 [shape = 's32[2]{0}', space=sflag, size = 0x8, scoped, tag = 'scoped memory for tpu_custom_call.1']
    %15 = vsyncpa [#allocation5], 0
    %s16 = scalar_lea.sflag [#allocation5], 1
    %17 = vsyncpa %s16, 0
    loop: start=0, step=1, limit=8
    $region2: #{tpu_custom_call.1} parent=1 // loop_pre_header
      _
    $region3: #{tpu_custom_call.1} parent=1 // loop_header
      %s19 = sphi 0, %s23
      %p20 = scmp.ge.s32.totalorder %s19, 8
      %s26 = sphi 0, %s38
      %s27 = sphi 0, %s34
      %s28 = sphi 0, %s26
      %s29 = sphi 0, %s27
      %s30 = sphi 0, %s28
      %s31 = sphi 0, %s29
      %s41 = sphi 0, %s43
      %s44 = sphi 0, %s41
      %s45 = sphi 0, %s44
      %s61 = sphi 0, %s45
      %s65 = sphi 0, %s65
      %s67 = sphi 0, %s65
      %s68 = sphi 0, %s67
      %s82 = sphi 0, %s68
      %s88 = sphi 0, %s90
      %s91 = sphi 0, %s88
      %s92 = sphi 0, %s91
      %s108 = sphi 0, %s92
      %s114 = sphi 0, %s116
      %s117 = sphi 0, %s114
      %s118 = sphi 0, %s117
      %s134 = sphi 0, %s118
      %s140 = sphi 0, %s142
      %s143 = sphi 0, %s140
      %s144 = sphi 0, %s143
      %s160 = sphi 0, %s144
      %s166 = sphi 0, %s168
      %s169 = sphi 0, %s166
      %s170 = sphi 0, %s169
      %s186 = sphi 0, %s170
      %s192 = sphi 0, %s194
      %s195 = sphi 0, %s192
      %s196 = sphi 0, %s195
      %s212 = sphi 0, %s196
      %s218 = sphi 0, %s220
      %s221 = sphi 0, %s218
      %s222 = sphi 0, %s221
      %s238 = sphi 0, %s222
      %s244 = sphi 0, %s246
      %s247 = sphi 0, %s244
      %s248 = sphi 0, %s247
      %s264 = sphi 0, %s248
      %s270 = sphi 0, %s272
      %s273 = sphi 0, %s270
      %s274 = sphi 0, %s273
      %s290 = sphi 0, %s274
      %s296 = sphi 0, %s298
      %s299 = sphi 0, %s296
      %s300 = sphi 0, %s299
      %s316 = sphi 0, %s300
    $region4: #{tpu_custom_call.1} parent=1 // loop_header_branch
      %22 = sbr.rel (%p20) target = $region8
    $region5: #{tpu_custom_call.1} parent=1 // loop_body
      %s24 = ssub.s32 %s19, 1
      %s25 = ssub.s32 %s19, 2
      %s32 = sadd.s32 1, %s27
      %p33 = scmp.ge.s32.totalorder %s32, 3
      %s34 = scalar_select %p33, 0, %s32
      %s35 = sadd.s32 1, %s26
      %s36 = scalar_select %p33, %s35, %s26
      %p37 = scmp.ge.s32.totalorder %s36, 2
      %s38 = scalar_select %p37, 0, %s36
      %s39 = ssub.s32 %s26, %s38
      %p40 = scmp.eq.s32.totalorder %s39, 0
      %s42 = sadd.s32 %s41, 1
      %s43 = scalar_select %p40, %s41, %s42
      %p46 = pneg %p40
      %p47 = scmp.eq.s32.totalorder %s19, 5
      %p48 = por %p46, %p47
      %p49 = scmp.ne.s32.totalorder %s41, %s44
      %p50 = scmp.eq.s32.totalorder %s19, 0
      %p51 = por %p49, %p50
      %p52 = scmp.ne.s32.totalorder %s41, %s44
      %p53 = scmp.eq.s32.totalorder %s24, 5
      %p54 = por %p52, %p53
      %p55 = scmp.ne.s32.totalorder %s44, %s45
      %p56 = scmp.eq.s32.totalorder %s24, 0
      %p57 = por %p55, %p56
      %p58 = scmp.ne.s32.totalorder %s44, %s45
      %p59 = scmp.eq.s32.totalorder %s25, 5
      %p60 = por %p58, %p59
      %p62 = scmp.ne.s32.totalorder %s45, %s61
      %p63 = scmp.eq.s32.totalorder %s25, 0
      %p64 = por %p62, %p63
      %s66 = sadd.s32 %s65, 1
      %p69 = scmp.eq.s32.totalorder %s19, 5
      %p70 = scmp.ne.s32.totalorder %s65, %s67
      %p71 = scmp.eq.s32.totalorder %s19, 0
      %p72 = por %p70, %p71
      %p73 = scmp.ne.s32.totalorder %s65, %s67
      %p74 = scmp.eq.s32.totalorder %s24, 5
      %p75 = por %p73, %p74
      %p76 = scmp.ne.s32.totalorder %s67, %s68
      %p77 = scmp.eq.s32.totalorder %s24, 0
      %p78 = por %p76, %p77
      %p79 = scmp.ne.s32.totalorder %s67, %s68
      %p80 = scmp.eq.s32.totalorder %s25, 5
      %p81 = por %p79, %p80
      %p83 = scmp.ne.s32.totalorder %s68, %s82
      %p84 = scmp.eq.s32.totalorder %s25, 0
      %p85 = por %p83, %p84
      %s86 = ssub.s32 %s27, %s34
      %p87 = scmp.eq.s32.totalorder %s86, 0
      %s89 = sadd.s32 %s88, 1
      %s90 = scalar_select %p87, %s88, %s89
      %p93 = pneg %p87
      %p94 = scmp.eq.s32.totalorder %s19, 5
      %p95 = por %p93, %p94
      %p96 = scmp.ne.s32.totalorder %s88, %s91
      %p97 = scmp.eq.s32.totalorder %s19, 0
      %p98 = por %p96, %p97
      %p99 = scmp.ne.s32.totalorder %s88, %s91
      %p100 = scmp.eq.s32.totalorder %s24, 5
      %p101 = por %p99, %p100
      %p102 = scmp.ne.s32.totalorder %s91, %s92
      %p103 = scmp.eq.s32.totalorder %s24, 0
      %p104 = por %p102, %p103
      %p105 = scmp.ne.s32.totalorder %s91, %s92
      %p106 = scmp.eq.s32.totalorder %s25, 5
      %p107 = por %p105, %p106
      %p109 = scmp.ne.s32.totalorder %s92, %s108
      %p110 = scmp.eq.s32.totalorder %s25, 0
      %p111 = por %p109, %p110
      %s112 = ssub.s32 %s27, %s34
      %p113 = scmp.eq.s32.totalorder %s112, 0
      %s115 = sadd.s32 %s114, 1
      %s116 = scalar_select %p113, %s114, %s115
      %p119 = pneg %p113
      %p120 = scmp.eq.s32.totalorder %s19, 5
      %p121 = por %p119, %p120
      %p122 = scmp.ne.s32.totalorder %s114, %s117
      %p123 = scmp.eq.s32.totalorder %s19, 0
      %p124 = por %p122, %p123
      %p125 = scmp.ne.s32.totalorder %s114, %s117
      %p126 = scmp.eq.s32.totalorder %s24, 5
      %p127 = por %p125, %p126
      %p128 = scmp.ne.s32.totalorder %s117, %s118
      %p129 = scmp.eq.s32.totalorder %s24, 0
      %p130 = por %p128, %p129
      %p131 = scmp.ne.s32.totalorder %s117, %s118
      %p132 = scmp.eq.s32.totalorder %s25, 5
      %p133 = por %p131, %p132
      %p135 = scmp.ne.s32.totalorder %s118, %s134
      %p136 = scmp.eq.s32.totalorder %s25, 0
      %p137 = por %p135, %p136
      %s138 = ssub.s32 %s27, %s34
      %p139 = scmp.eq.s32.totalorder %s138, 0
      %s141 = sadd.s32 %s140, 1
      %s142 = scalar_select %p139, %s140, %s141
      %p145 = pneg %p139
      %p146 = scmp.eq.s32.totalorder %s19, 5
      %p147 = por %p145, %p146
      %p148 = scmp.ne.s32.totalorder %s140, %s143
      %p149 = scmp.eq.s32.totalorder %s19, 0
      %p150 = por %p148, %p149
      %p151 = scmp.ne.s32.totalorder %s140, %s143
      %p152 = scmp.eq.s32.totalorder %s24, 5
      %p153 = por %p151, %p152
      %p154 = scmp.ne.s32.totalorder %s143, %s144
      %p155 = scmp.eq.s32.totalorder %s24, 0
      %p156 = por %p154, %p155
      %p157 = scmp.ne.s32.totalorder %s143, %s144
      %p158 = scmp.eq.s32.totalorder %s25, 5
      %p159 = por %p157, %p158
      %p161 = scmp.ne.s32.totalorder %s144, %s160
      %p162 = scmp.eq.s32.totalorder %s25, 0
      %p163 = por %p161, %p162
      %s164 = ssub.s32 %s27, %s34
      %p165 = scmp.eq.s32.totalorder %s164, 0
      %s167 = sadd.s32 %s166, 1
      %s168 = scalar_select %p165, %s166, %s167
      %p171 = pneg %p165
      %p172 = scmp.eq.s32.totalorder %s19, 5
      %p173 = por %p171, %p172
      %p174 = scmp.ne.s32.totalorder %s166, %s169
      %p175 = scmp.eq.s32.totalorder %s19, 0
      %p176 = por %p174, %p175
      %p177 = scmp.ne.s32.totalorder %s166, %s169
      %p178 = scmp.eq.s32.totalorder %s24, 5
      %p179 = por %p177, %p178
      %p180 = scmp.ne.s32.totalorder %s169, %s170
      %p181 = scmp.eq.s32.totalorder %s24, 0
      %p182 = por %p180, %p181
      %p183 = scmp.ne.s32.totalorder %s169, %s170
      %p184 = scmp.eq.s32.totalorder %s25, 5
      %p185 = por %p183, %p184
      %p187 = scmp.ne.s32.totalorder %s170, %s186
      %p188 = scmp.eq.s32.totalorder %s25, 0
      %p189 = por %p187, %p188
      %s190 = ssub.s32 %s27, %s34
      %p191 = scmp.eq.s32.totalorder %s190, 0
      %s193 = sadd.s32 %s192, 1
      %s194 = scalar_select %p191, %s192, %s193
      %p197 = pneg %p191
      %p198 = scmp.eq.s32.totalorder %s19, 5
      %p199 = por %p197, %p198
      %p200 = scmp.ne.s32.totalorder %s192, %s195
      %p201 = scmp.eq.s32.totalorder %s19, 0
      %p202 = por %p200, %p201
      %p203 = scmp.ne.s32.totalorder %s192, %s195
      %p204 = scmp.eq.s32.totalorder %s24, 5
      %p205 = por %p203, %p204
      %p206 = scmp.ne.s32.totalorder %s195, %s196
      %p207 = scmp.eq.s32.totalorder %s24, 0
      %p208 = por %p206, %p207
      %p209 = scmp.ne.s32.totalorder %s195, %s196
      %p210 = scmp.eq.s32.totalorder %s25, 5
      %p211 = por %p209, %p210
      %p213 = scmp.ne.s32.totalorder %s196, %s212
      %p214 = scmp.eq.s32.totalorder %s25, 0
      %p215 = por %p213, %p214
      %s216 = ssub.s32 %s27, %s34
      %p217 = scmp.eq.s32.totalorder %s216, 0
      %s219 = sadd.s32 %s218, 1
      %s220 = scalar_select %p217, %s218, %s219
      %p223 = pneg %p217
      %p224 = scmp.eq.s32.totalorder %s19, 5
      %p225 = por %p223, %p224
      %p226 = scmp.ne.s32.totalorder %s218, %s221
      %p227 = scmp.eq.s32.totalorder %s19, 0
      %p228 = por %p226, %p227
      %p229 = scmp.ne.s32.totalorder %s218, %s221
      %p230 = scmp.eq.s32.totalorder %s24, 5
      %p231 = por %p229, %p230
      %p232 = scmp.ne.s32.totalorder %s221, %s222
      %p233 = scmp.eq.s32.totalorder %s24, 0
      %p234 = por %p232, %p233
      %p235 = scmp.ne.s32.totalorder %s221, %s222
      %p236 = scmp.eq.s32.totalorder %s25, 5
      %p237 = por %p235, %p236
      %p239 = scmp.ne.s32.totalorder %s222, %s238
      %p240 = scmp.eq.s32.totalorder %s25, 0
      %p241 = por %p239, %p240
      %s242 = ssub.s32 %s27, %s34
      %p243 = scmp.eq.s32.totalorder %s242, 0
      %s245 = sadd.s32 %s244, 1
      %s246 = scalar_select %p243, %s244, %s245
      %p249 = pneg %p243
      %p250 = scmp.eq.s32.totalorder %s19, 5
      %p251 = por %p249, %p250
      %p252 = scmp.ne.s32.totalorder %s244, %s247
      %p253 = scmp.eq.s32.totalorder %s19, 0
      %p254 = por %p252, %p253
      %p255 = scmp.ne.s32.totalorder %s244, %s247
      %p256 = scmp.eq.s32.totalorder %s24, 5
      %p257 = por %p255, %p256
      %p258 = scmp.ne.s32.totalorder %s247, %s248
      %p259 = scmp.eq.s32.totalorder %s24, 0
      %p260 = por %p258, %p259
      %p261 = scmp.ne.s32.totalorder %s247, %s248
      %p262 = scmp.eq.s32.totalorder %s25, 5
      %p263 = por %p261, %p262
      %p265 = scmp.ne.s32.totalorder %s248, %s264
      %p266 = scmp.eq.s32.totalorder %s25, 0
      %p267 = por %p265, %p266
      %s268 = ssub.s32 %s27, %s34
      %p269 = scmp.eq.s32.totalorder %s268, 0
      %s271 = sadd.s32 %s270, 1
      %s272 = scalar_select %p269, %s270, %s271
      %p275 = pneg %p269
      %p276 = scmp.eq.s32.totalorder %s19, 5
      %p277 = por %p275, %p276
      %p278 = scmp.ne.s32.totalorder %s270, %s273
      %p279 = scmp.eq.s32.totalorder %s19, 0
      %p280 = por %p278, %p279
      %p281 = scmp.ne.s32.totalorder %s270, %s273
      %p282 = scmp.eq.s32.totalorder %s24, 5
      %p283 = por %p281, %p282
      %p284 = scmp.ne.s32.totalorder %s273, %s274
      %p285 = scmp.eq.s32.totalorder %s24, 0
      %p286 = por %p284, %p285
      %p287 = scmp.ne.s32.totalorder %s273, %s274
      %p288 = scmp.eq.s32.totalorder %s25, 5
      %p289 = por %p287, %p288
      %p291 = scmp.ne.s32.totalorder %s274, %s290
      %p292 = scmp.eq.s32.totalorder %s25, 0
      %p293 = por %p291, %p292
      %s294 = ssub.s32 %s26, %s38
      %p295 = scmp.eq.s32.totalorder %s294, 0
      %s297 = sadd.s32 %s296, 1
      %s298 = scalar_select %p295, %s296, %s297
      %p301 = pneg %p295
      %p302 = scmp.eq.s32.totalorder %s19, 5
      %p303 = por %p301, %p302
      %p304 = scmp.ne.s32.totalorder %s296, %s299
      %p305 = scmp.eq.s32.totalorder %s19, 0
      %p306 = por %p304, %p305
      %p307 = scmp.ne.s32.totalorder %s296, %s299
      %p308 = scmp.eq.s32.totalorder %s24, 5
      %p309 = por %p307, %p308
      %p310 = scmp.ne.s32.totalorder %s299, %s300
      %p311 = scmp.eq.s32.totalorder %s24, 0
      %p312 = por %p310, %p311
      %p313 = scmp.ne.s32.totalorder %s299, %s300
      %p314 = scmp.eq.s32.totalorder %s25, 5
      %p315 = por %p313, %p314
      %p317 = scmp.ne.s32.totalorder %s300, %s316
      %p318 = scmp.eq.s32.totalorder %s25, 0
      %p319 = por %p317, %p318
      %p320 = scmp.le.s32.totalorder 1, %s19
      %p321 = scmp.lt.s32.totalorder %s19, 7
      %p322 = pnand %p320, %p321
      %p323 = pneg %p322
      // Predicated region
      $region9: #{tpu_custom_call.1} parent=5 // pred_check
        _
      $region10: #{tpu_custom_call.1} parent=5 // pred_check_branch
        %325 = sbr.rel (%p322) target = $region12
      $region11: #{tpu_custom_call.1} parent=5 // pred_region
        %s326 = ssub.s32 %s19, 1
        // Predicated region
        $region13: #{tpu_custom_call.1} parent=11 // pred_check
          %p327 = pneg %p78
        $region14: #{tpu_custom_call.1} parent=11 // pred_check_branch
          %329 = sbr.rel (%p327) target = $region16
        $region15: #{tpu_custom_call.1} parent=11 // pred_region
          _
        $region16: #{tpu_custom_call.1} parent=11 // pred_fallthru
          _
      $region12: #{tpu_custom_call.1} parent=5 // pred_fallthru
        _
      %p330 = scmp.lt.s32.totalorder %s19, 6
      // Predicated region
      $region17: #{tpu_custom_call.1} parent=5 // pred_check
        %p331 = pneg %p330
      $region18: #{tpu_custom_call.1} parent=5 // pred_check_branch
        %333 = sbr.rel (%p331) target = $region20
      $region19: #{tpu_custom_call.1} parent=5 // pred_region
        // Predicated region
        $region21: #{tpu_custom_call.1} parent=19 // pred_check
          %p334 = pneg %p51
        $region22: #{tpu_custom_call.1} parent=19 // pred_check_branch
          %336 = sbr.rel (%p334) target = $region24
        $region23: #{tpu_custom_call.1} parent=19 // pred_region
          %p337 = scmp.lt.s32.totalorder %s26, 1
          %s338 = scalar_select %p337, %s26, 1
          %s339 = smul.addr %s338, 2
          %s340 = smul.addr %s339, 8
          %s341 = scalar_lea.vmem %s0, %s340
        $region24: #{tpu_custom_call.1} parent=19 // pred_fallthru
          _
        // Predicated region
        $region25: #{tpu_custom_call.1} parent=19 // pred_check
          %p342 = pneg %p98
        $region26: #{tpu_custom_call.1} parent=19 // pred_check_branch
          %344 = sbr.rel (%p342) target = $region28
        $region27: #{tpu_custom_call.1} parent=19 // pred_region
          %p345 = scmp.lt.s32.totalorder %s27, 2
          %s346 = scalar_select %p345, %s27, 2
          %s347 = smul.addr %s346, 8
          %s348 = scalar_lea.vmem %s2, %s347
        $region28: #{tpu_custom_call.1} parent=19 // pred_fallthru
          _
        // Predicated region
        $region29: #{tpu_custom_call.1} parent=19 // pred_check
          %p349 = pneg %p124
        $region30: #{tpu_custom_call.1} parent=19 // pred_check_branch
          %351 = sbr.rel (%p349) target = $region32
        $region31: #{tpu_custom_call.1} parent=19 // pred_region
          %p352 = scmp.lt.s32.totalorder %s27, 2
          %s353 = scalar_select %p352, %s27, 2
          %s354 = smul.addr %s353, 8
          %s355 = scalar_lea.vmem %s3, %s354
        $region32: #{tpu_custom_call.1} parent=19 // pred_fallthru
          _
        // Predicated region
        $region33: #{tpu_custom_call.1} parent=19 // pred_check
          %p356 = pneg %p150
        $region34: #{tpu_custom_call.1} parent=19 // pred_check_branch
          %358 = sbr.rel (%p356) target = $region36
        $region35: #{tpu_custom_call.1} parent=19 // pred_region
          %p359 = scmp.lt.s32.totalorder %s27, 2
          %s360 = scalar_select %p359, %s27, 2
          %s361 = smul.addr %s360, 8
          %s362 = scalar_lea.vmem %s4, %s361
        $region36: #{tpu_custom_call.1} parent=19 // pred_fallthru
          _
        // Predicated region
        $region37: #{tpu_custom_call.1} parent=19 // pred_check
          %p363 = pneg %p176
        $region38: #{tpu_custom_call.1} parent=19 // pred_check_branch
          %365 = sbr.rel (%p363) target = $region40
        $region39: #{tpu_custom_call.1} parent=19 // pred_region
          %p366 = scmp.lt.s32.totalorder %s27, 2
          %s367 = scalar_select %p366, %s27, 2
          %s368 = smul.addr %s367, 8
          %s369 = scalar_lea.vmem %s5, %s368
        $region40: #{tpu_custom_call.1} parent=19 // pred_fallthru
          _
        // Predicated region
        $region41: #{tpu_custom_call.1} parent=19 // pred_check
          %p370 = pneg %p202
        $region42: #{tpu_custom_call.1} parent=19 // pred_check_branch
          %372 = sbr.rel (%p370) target = $region44
        $region43: #{tpu_custom_call.1} parent=19 // pred_region
          %p373 = scmp.lt.s32.totalorder %s27, 2
          %s374 = scalar_select %p373, %s27, 2
          %s375 = smul.addr %s374, 8
          %s376 = scalar_lea.vmem %s6, %s375
        $region44: #{tpu_custom_call.1} parent=19 // pred_fallthru
          _
        // Predicated region
        $region45: #{tpu_custom_call.1} parent=19 // pred_check
          %p377 = pneg %p228
        $region46: #{tpu_custom_call.1} parent=19 // pred_check_branch
          %379 = sbr.rel (%p377) target = $region48
        $region47: #{tpu_custom_call.1} parent=19 // pred_region
          %p380 = scmp.lt.s32.totalorder %s27, 2
          %s381 = scalar_select %p380, %s27, 2
          %s382 = scalar_lea.vmem %s7, %s381
        $region48: #{tpu_custom_call.1} parent=19 // pred_fallthru
          _
        // Predicated region
        $region49: #{tpu_custom_call.1} parent=19 // pred_check
          %p383 = pneg %p254
        $region50: #{tpu_custom_call.1} parent=19 // pred_check_branch
          %385 = sbr.rel (%p383) target = $region52
        $region51: #{tpu_custom_call.1} parent=19 // pred_region
          %p386 = scmp.lt.s32.totalorder %s27, 2
          %s387 = scalar_select %p386, %s27, 2
          %s388 = smul.addr %s387, 8
          %s389 = scalar_lea.vmem %s8, %s388
        $region52: #{tpu_custom_call.1} parent=19 // pred_fallthru
          _
        // Predicated region
        $region53: #{tpu_custom_call.1} parent=19 // pred_check
          %p390 = pneg %p280
        $region54: #{tpu_custom_call.1} parent=19 // pred_check_branch
          %392 = sbr.rel (%p390) target = $region56
        $region55: #{tpu_custom_call.1} parent=19 // pred_region
          %p393 = scmp.lt.s32.totalorder %s27, 2
          %s394 = scalar_select %p393, %s27, 2
          %s395 = smul.addr %s394, 8
          %s396 = scalar_lea.vmem %s9, %s395
        $region56: #{tpu_custom_call.1} parent=19 // pred_fallthru
          _
      $region20: #{tpu_custom_call.1} parent=5 // pred_fallthru
        _
      %p397 = scmp.le.s32.totalorder 1, %s19
      %p398 = scmp.lt.s32.totalorder %s19, 7
      %p399 = pnand %p397, %p398
      %p400 = pneg %p399
      // Predicated region
      $region57: #{tpu_custom_call.1} parent=5 // pred_check
        _
      $region58: #{tpu_custom_call.1} parent=5 // pred_check_branch
        %402 = sbr.rel (%p399) target = $region60
      $region59: #{tpu_custom_call.1} parent=5 // pred_region
        %s403 = ssub.s32 %s19, 1
        %p404 = scmp.lt.s32.totalorder %s28, 1
        %s405 = scalar_select %p404, %s28, 1
        %s406 = smul.addr %s405, 2
        %s407 = smul.addr %s406, 8
        %s408 = scalar_lea.vmem %s0, %s407
        %p409 = pneg %p57
        %p410 = pneg %p54
        %p411 = pneg %p78
        %p412 = pneg %p75
        %p413 = scmp.lt.s32.totalorder %s29, 2
        %s414 = scalar_select %p413, %s29, 2
        %s415 = smul.addr %s414, 8
        %s416 = scalar_lea.vmem %s2, %s415
        %p417 = pneg %p104
        %p418 = pneg %p101
        %p419 = scmp.lt.s32.totalorder %s29, 2
        %s420 = scalar_select %p419, %s29, 2
        %s421 = smul.addr %s420, 8
        %s422 = scalar_lea.vmem %s3, %s421
        %p423 = pneg %p130
        %p424 = pneg %p127
        %p425 = scmp.lt.s32.totalorder %s29, 2
        %s426 = scalar_select %p425, %s29, 2
        %s427 = smul.addr %s426, 8
        %s428 = scalar_lea.vmem %s4, %s427
        %p429 = pneg %p156
        %p430 = pneg %p153
        %p431 = scmp.lt.s32.totalorder %s29, 2
        %s432 = scalar_select %p431, %s29, 2
        %s433 = smul.addr %s432, 8
        %s434 = scalar_lea.vmem %s5, %s433
        %p435 = pneg %p182
        %p436 = pneg %p179
        %p437 = scmp.lt.s32.totalorder %s29, 2
        %s438 = scalar_select %p437, %s29, 2
        %s439 = smul.addr %s438, 8
        %s440 = scalar_lea.vmem %s6, %s439
        %p441 = pneg %p208
        %p442 = pneg %p205
        %p443 = scmp.lt.s32.totalorder %s29, 2
        %s444 = scalar_select %p443, %s29, 2
        %s445 = scalar_lea.vmem %s7, %s444
        %p446 = pneg %p234
        %p447 = pneg %p231
        %p448 = scmp.lt.s32.totalorder %s29, 2
        %s449 = scalar_select %p448, %s29, 2
        %s450 = smul.addr %s449, 8
        %s451 = scalar_lea.vmem %s8, %s450
        %p452 = pneg %p260
        %p453 = pneg %p257
        %p454 = scmp.lt.s32.totalorder %s29, 2
        %s455 = scalar_select %p454, %s29, 2
        %s456 = smul.addr %s455, 8
        %s457 = scalar_lea.vmem %s9, %s456
        %p458 = pneg %p286
        %p459 = pneg %p283
        %p460 = pneg %p312
        %p461 = pneg %p309
        %s462 = sand.u32 %s299, 1
        %s463 = scalar_lea.sflag [#allocation5], %s462
        %s464 = sand.u32 %s299, 1
        %s465 = smul.addr %s464, 16
        %s466 = scalar_lea.vmem [#allocation4], %s465
        %p467 = scmp.lt.s32.totalorder %s28, 1
        %s468 = scalar_select %p467, %s28, 1
        %s469 = smul.addr %s468, 2
        %s470 = smul.addr %s469, 8
        %s471 = scalar_lea.vmem %s0, %s470
        %p472 = scmp.lt.s32.totalorder %s29, 2
        %s473 = scalar_select %p472, %s29, 2
        %s474 = smul.addr %s473, 8
        %s475 = scalar_lea.vmem %s2, %s474
        %p476 = scmp.lt.s32.totalorder %s29, 2
        %s477 = scalar_select %p476, %s29, 2
        %s478 = smul.addr %s477, 8
        %s479 = scalar_lea.vmem %s3, %s478
        %p480 = scmp.lt.s32.totalorder %s29, 2
        %s481 = scalar_select %p480, %s29, 2
        %s482 = smul.addr %s481, 8
        %s483 = scalar_lea.vmem %s4, %s482
        %p484 = scmp.lt.s32.totalorder %s29, 2
        %s485 = scalar_select %p484, %s29, 2
        %s486 = smul.addr %s485, 8
        %s487 = scalar_lea.vmem %s5, %s486
        %p488 = scmp.lt.s32.totalorder %s29, 2
        %s489 = scalar_select %p488, %s29, 2
        %s490 = smul.addr %s489, 8
        %s491 = scalar_lea.vmem %s6, %s490
        %p492 = scmp.lt.s32.totalorder %s29, 2
        %s493 = scalar_select %p492, %s29, 2
        %s494 = scalar_lea.vmem %s7, %s493
        %p495 = scmp.lt.s32.totalorder %s29, 2
        %s496 = scalar_select %p495, %s29, 2
        %s497 = smul.addr %s496, 8
        %s498 = scalar_lea.vmem %s8, %s497
        %p499 = scmp.lt.s32.totalorder %s29, 2
        %s500 = scalar_select %p499, %s29, 2
        %s501 = smul.addr %s500, 8
        %s502 = scalar_lea.vmem %s9, %s501
        %p503 = scmp.eq.s32.totalorder %s29, 0
        // Predicated region
        $region61: #{tpu_custom_call.1} parent=59 // pred_check
          %p504 = pneg %p503
        $region62: #{tpu_custom_call.1} parent=59 // pred_check_branch
          %506 = sbr.rel (%p504) target = $region64
        $region63: #{tpu_custom_call.1} parent=59 // pred_region
          %507 = vst [vmem:[#allocation3] sm:$0xff] 0.0
          %508 = vst [vmem:[#allocation3 + $0x8] sm:$0xff] 0.0
          %vm509 = vcmask 277504
          %510 = vst.msk [vmem:[#allocation3 + $0x10] sm:$0xff] %vm509, 0.0
          %v511 = vld [vmem:[%s471] sm:$0xff]
          %v512 = vld [vmem:[%s471 + $0x8] sm:$0xff]
          %513 = vst [vmem:[#allocation2] sm:$0xff] %v511
          %514 = vst [vmem:[#allocation2 + $0x8] sm:$0xff] %v512
        $region64: #{tpu_custom_call.1} parent=59 // pred_fallthru
          _
        %p515 = scmp.lt.s32.totalorder %s29, 2
        // Predicated region
        $region65: #{tpu_custom_call.1} parent=59 // pred_check
          %p516 = pneg %p515
        $region66: #{tpu_custom_call.1} parent=59 // pred_check_branch
          %518 = sbr.rel (%p516) target = $region68
        $region67: #{tpu_custom_call.1} parent=59 // pred_region
          %v519 = vld [vmem:[#allocation2] sm:$0xff]
          %v520 = vld [vmem:[#allocation2 + $0x8] sm:$0xff]
          %523 = vrot.lane.b32.xlu0 %v519, 17
          %v524 = vpop.permute.xlu0 %523
          %525 = vrot.lane.b32.xlu0 %v520, 17
          %v526 = vpop.permute.xlu0 %525
          %vm527 = vcmask 138240
          %v528 = vsel %vm527, %v524, %v526
          %vm532 = vcmask 1047688
          %533 = vst.msk [vmem:[#allocation3] sm:$0xff] %vm532, %v524
          %534 = vst [vmem:[#allocation3 + $0x8] sm:$0xff] %v528
          %535 = vst.msk [vmem:[#allocation3 + $0x10] sm:$0xff] %vm527, %v526
          %v536 = vld [vmem:[#allocation3] sm:$0xff]
          %v537 = vld [vmem:[#allocation3 + $0x8] sm:$0xff]
          %v538 = vld [vmem:[%s1] ss:$8 sm:$0x3]
          %v540 = vlaneseq
          %v541 = vshrl.u32 %v540, 7
          %v542 = vsub.s32 0, %v541
          %v543 = vrot.slane %v538, %v542
          %v544 = vlaneseq
          %v545 = vshrl.u32 %v544, 7
          %v546 = vsub.s32 1, %v545
          %v547 = vrot.slane %v538, %v546
          %v550 = vmul.f32 %v536, %v543
          %v551 = vmul.f32 %v537, %v547
          %v552 = vld [vmem:[#allocation3 + $0x10] sm:$0xff]
          %s553 = scalar_lea.vmem %s1, 1
          %v554 = vld [vmem:[%s553] ss:$8 sm:$0x3]
          %v556 = vlaneseq
          %v557 = vshrl.u32 %v556, 7
          %v558 = vsub.s32 0, %v557
          %v559 = vrot.slane %v554, %v558
          %v560 = vlaneseq
          %v561 = vshrl.u32 %v560, 7
          %v562 = vsub.s32 1, %v561
          %v563 = vrot.slane %v554, %v562
          %564 = vrot.lane.b32.xlu0 %v559, 1
          %v565 = vpop.permute.xlu0 %564
          %566 = vrot.lane.b32.xlu0 %v563, 1
          %v567 = vpop.permute.xlu0 %566
          %vm568 = vcmask 7168
          %v569 = vsel %vm568, %v565, %v567
          %v573 = vmul.f32 %v536, %v565
          %v574 = vmul.f32 %v537, %v569
          %v575 = vmul.f32 %v552, %v567
          %s576 = scalar_lea.vmem %s1, 2
          %v577 = vld [vmem:[%s576] ss:$8 sm:$0x3]
          %v579 = vlaneseq
          %v580 = vshrl.u32 %v579, 7
          %v581 = vsub.s32 0, %v580
          %v582 = vrot.slane %v577, %v581
          %v583 = vlaneseq
          %v584 = vshrl.u32 %v583, 7
          %v585 = vsub.s32 1, %v584
          %v586 = vrot.slane %v577, %v585
          %587 = vrot.lane.b32.xlu0 %v582, 2
          %v588 = vpop.permute.xlu0 %587
          %589 = vrot.lane.b32.xlu0 %v586, 2
          %v590 = vpop.permute.xlu0 %589
          %vm591 = vcmask 15360
          %v592 = vsel %vm591, %v588, %v590
          %v596 = vmul.f32 %v536, %v588
          %v597 = vmul.f32 %v537, %v592
          %v598 = vmul.f32 %v552, %v590
          %s599 = scalar_lea.vmem %s1, 3
          %v600 = vld [vmem:[%s599] ss:$8 sm:$0x3]
          %v602 = vlaneseq
          %v603 = vshrl.u32 %v602, 7
          %v604 = vsub.s32 0, %v603
          %v605 = vrot.slane %v600, %v604
          %v606 = vlaneseq
          %v607 = vshrl.u32 %v606, 7
          %v608 = vsub.s32 1, %v607
          %v609 = vrot.slane %v600, %v608
          %610 = vrot.lane.b32.xlu0 %v605, 16
          %v611 = vpop.permute.xlu0 %610
          %612 = vrot.lane.b32.xlu0 %v609, 16
          %v613 = vpop.permute.xlu0 %612
          %vm614 = vcmask 130048
          %v615 = vsel %vm614, %v611, %v613
          %v619 = vmul.f32 %v536, %v611
          %v620 = vmul.f32 %v537, %v615
          %v621 = vmul.f32 %v552, %v613
          %s622 = scalar_lea.vmem %s1, 5
          %v623 = vld [vmem:[%s622] ss:$8 sm:$0x3]
          %v625 = vlaneseq
          %v626 = vshrl.u32 %v625, 7
          %v627 = vsub.s32 0, %v626
          %v628 = vrot.slane %v623, %v627
          %v629 = vlaneseq
          %v630 = vshrl.u32 %v629, 7
          %v631 = vsub.s32 1, %v630
          %v632 = vrot.slane %v623, %v631
          %633 = vrot.lane.b32.xlu0 %v628, 18
          %v634 = vpop.permute.xlu0 %633
          %635 = vrot.lane.b32.xlu0 %v632, 18
          %v636 = vpop.permute.xlu0 %635
          %vm637 = vcmask 146432
          %v638 = vsel %vm637, %v634, %v636
          %v642 = vmul.f32 %v536, %v634
          %v643 = vmul.f32 %v537, %v638
          %v644 = vmul.f32 %v552, %v636
          %s645 = scalar_lea.vmem %s1, 6
          %v646 = vld [vmem:[%s645] ss:$8 sm:$0x3]
          %v648 = vlaneseq
          %v649 = vshrl.u32 %v648, 7
          %v650 = vsub.s32 0, %v649
          %v651 = vrot.slane %v646, %v650
          %v652 = vlaneseq
          %v653 = vshrl.u32 %v652, 7
          %v654 = vsub.s32 1, %v653
          %v655 = vrot.slane %v646, %v654
          %656 = vrot.lane.b32.xlu0 %v651, 32
          %v657 = vpop.permute.xlu0 %656
          %658 = vrot.lane.b32.xlu0 %v655, 32
          %v659 = vpop.permute.xlu0 %658
          %vm660 = vcmask 261120
          %v661 = vsel %vm660, %v657, %v659
          %v665 = vmul.f32 %v536, %v657
          %v666 = vmul.f32 %v537, %v661
          %v667 = vmul.f32 %v552, %v659
          %s668 = scalar_lea.vmem %s1, 7
          %v669 = vld [vmem:[%s668] ss:$8 sm:$0x3]
          %v671 = vlaneseq
          %v672 = vshrl.u32 %v671, 7
          %v673 = vsub.s32 0, %v672
          %v674 = vrot.slane %v669, %v673
          %v675 = vlaneseq
          %v676 = vshrl.u32 %v675, 7
          %v677 = vsub.s32 1, %v676
          %v678 = vrot.slane %v669, %v677
          %679 = vrot.lane.b32.xlu0 %v674, 33
          %v680 = vpop.permute.xlu0 %679
          %681 = vrot.lane.b32.xlu0 %v678, 33
          %v682 = vpop.permute.xlu0 %681
          %vm683 = vcmask 269312
          %v684 = vsel %vm683, %v680, %v682
          %v688 = vmul.f32 %v536, %v680
          %v689 = vmul.f32 %v537, %v684
          %v690 = vmul.f32 %v552, %v682
          %s691 = scalar_lea.vmem %s1, 16
          %v692 = vld [vmem:[%s691] ss:$8 sm:$0x3]
          %v694 = vlaneseq
          %v695 = vshrl.u32 %v694, 7
          %v696 = vsub.s32 0, %v695
          %v697 = vrot.slane %v692, %v696
          %v698 = vlaneseq
          %v699 = vshrl.u32 %v698, 7
          %v700 = vsub.s32 1, %v699
          %v701 = vrot.slane %v692, %v700
          %702 = vrot.lane.b32.xlu0 %v697, 34
          %v703 = vpop.permute.xlu0 %702
          %704 = vrot.lane.b32.xlu0 %v701, 34
          %v705 = vpop.permute.xlu0 %704
          %vm706 = vcmask 277504
          %v707 = vsel %vm706, %v703, %v705
          %v711 = vmul.f32 %v536, %v703
          %v712 = vmul.f32 %v537, %v707
          %v713 = vmul.f32 %v552, %v705
          %717 = vrot.lane.b32.xlu0 %v573, 127
          %v718 = vpop.permute.xlu0 %717
          %719 = vrot.lane.b32.xlu0 %v574, 127
          %v720 = vpop.permute.xlu0 %719
          %721 = vrot.lane.b32.xlu0 %v575, 127
          %v722 = vpop.permute.xlu0 %721
          %vm723 = vcmask 1039360
          %v724 = vsel %vm723, %v718, %v720
          %v725 = vsel %vm723, %v720, %v722
          %731 = vrot.lane.b32.xlu0 %v596, 126
          %v732 = vpop.permute.xlu0 %731
          %733 = vrot.lane.b32.xlu0 %v597, 126
          %v734 = vpop.permute.xlu0 %733
          %735 = vrot.lane.b32.xlu0 %v598, 126
          %v736 = vpop.permute.xlu0 %735
          %vm737 = vcmask 1031168
          %v738 = vsel %vm737, %v732, %v734
          %v739 = vsel %vm737, %v734, %v736
          %745 = vrot.lane.b32.xlu0 %v619, 112
          %v746 = vpop.permute.xlu0 %745
          %747 = vrot.lane.b32.xlu0 %v620, 112
          %v748 = vpop.permute.xlu0 %747
          %749 = vrot.lane.b32.xlu0 %v621, 112
          %v750 = vpop.permute.xlu0 %749
          %vm751 = vcmask 916480
          %v752 = vsel %vm751, %v746, %v748
          %v753 = vsel %vm751, %v748, %v750
          %759 = vrot.lane.b32.xlu0 %v642, 110
          %v760 = vpop.permute.xlu0 %759
          %761 = vrot.lane.b32.xlu0 %v643, 110
          %v762 = vpop.permute.xlu0 %761
          %763 = vrot.lane.b32.xlu0 %v644, 110
          %v764 = vpop.permute.xlu0 %763
          %vm765 = vcmask 900096
          %v766 = vsel %vm765, %v760, %v762
          %v767 = vsel %vm765, %v762, %v764
          %773 = vrot.lane.b32.xlu0 %v665, 96
          %v774 = vpop.permute.xlu0 %773
          %775 = vrot.lane.b32.xlu0 %v666, 96
          %v776 = vpop.permute.xlu0 %775
          %777 = vrot.lane.b32.xlu0 %v667, 96
          %v778 = vpop.permute.xlu0 %777
          %vm779 = vcmask 785408
          %v780 = vsel %vm779, %v774, %v776
          %v781 = vsel %vm779, %v776, %v778
          %787 = vrot.lane.b32.xlu0 %v688, 95
          %v788 = vpop.permute.xlu0 %787
          %789 = vrot.lane.b32.xlu0 %v689, 95
          %v790 = vpop.permute.xlu0 %789
          %791 = vrot.lane.b32.xlu0 %v690, 95
          %v792 = vpop.permute.xlu0 %791
          %vm793 = vcmask 777216
          %v794 = vsel %vm793, %v788, %v790
          %v795 = vsel %vm793, %v790, %v792
          %801 = vrot.lane.b32.xlu0 %v711, 94
          %v802 = vpop.permute.xlu0 %801
          %803 = vrot.lane.b32.xlu0 %v712, 94
          %v804 = vpop.permute.xlu0 %803
          %805 = vrot.lane.b32.xlu0 %v713, 94
          %v806 = vpop.permute.xlu0 %805
          %vm807 = vcmask 769024
          %v808 = vsel %vm807, %v802, %v804
          %v809 = vsel %vm807, %v804, %v806
          %v812 = vld [vmem:[%s475] sm:$0xff]
          %v813 = vld [vmem:[%s479] sm:$0xff]
          %815 = vset.pattern.permute.xlu0 0
          %816 = vperm.xlu0 %815, %v813
          %v817 = vpop.permute.xlu0 %816
          %vm819 = vcmask 588800
          %v821 = vsel %vm819, %v812, 0
          %823 = vmatprep.subr.mxu0 0.0
          %824 = vmatpush1.msra.mxu0 0.0
          %825 = vmatprep.subr.mxu0 0.0
          %826 = vmatpush1.msra.mxu0 0.0
          %827 = vmatprep.subr.mxu0 0.0
          %828 = vmatpush1.msra.mxu0 0.0
          %829 = vmatprep.subr.mxu0 0.0
          %830 = vmatpush1.msra.mxu0 0.0
          %831 = vmatprep.subr.mxu0 0.0
          %832 = vmatpush1.msra.mxu0 0.0
          %833 = vmatprep.subr.mxu0 0.0
          %834 = vmatpush1.msra.mxu0 0.0
          %835 = vmatprep.subr.mxu0 0.0
          %836 = vmatpush1.msra.mxu0 0.0
          %837 = vmatprep.subr.mxu0 %v809
          %838 = vmatpush1.msra.mxu0 %v808
          %839 = vmatprep.subr.mxu0 %v795
          %840 = vmatpush1.msra.mxu0 %v794
          %841 = vmatprep.subr.mxu0 %v781
          %842 = vmatpush1.msra.mxu0 %v780
          %843 = vmatprep.subr.mxu0 %v767
          %844 = vmatpush1.msra.mxu0 %v766
          %845 = vmatprep.subr.mxu0 %v520
          %846 = vmatpush1.msra.mxu0 %v519
          %847 = vmatprep.subr.mxu0 %v753
          %848 = vmatpush1.msra.mxu0 %v752
          %849 = vmatprep.subr.mxu0 %v739
          %850 = vmatpush1.msra.mxu0 %v738
          %851 = vmatprep.subr.mxu0 %v725
          %852 = vmatpush1.msra.mxu0 %v724
          %853 = vmatprep.subr.mxu0 %v551
          %854 = vmatpush1.msra.mxu0 %v550
          %855 = vmatprep.subr.mxu0 0.0
          %856 = vmatpush2.msra.mxu0 0.0
          %857 = vmatprep.subr.mxu0 0.0
          %858 = vmatpush2.msra.mxu0 0.0
          %859 = vmatprep.subr.mxu0 0.0
          %860 = vmatpush2.msra.mxu0 0.0
          %861 = vmatprep.subr.mxu0 0.0
          %862 = vmatpush2.msra.mxu0 0.0
          %863 = vmatprep.subr.mxu0 0.0
          %864 = vmatpush2.msra.mxu0 0.0
          %865 = vmatprep.subr.mxu0 0.0
          %866 = vmatpush2.msra.mxu0 0.0
          %867 = vmatprep.subr.mxu0 0.0
          %868 = vmatpush2.msra.mxu0 0.0
          %869 = vmatprep.subr.mxu0 0.0
          %870 = vmatpush2.msra.mxu0 0.0
          %871 = vmatprep.subr.mxu0 0.0
          %872 = vmatpush2.msra.mxu0 0.0
          %873 = vmatprep.subr.mxu0 0.0
          %874 = vmatpush2.msra.mxu0 0.0
          %875 = vmatprep.subr.mxu0 0.0
          %876 = vmatpush2.msra.mxu0 0.0
          %877 = vmatprep.subr.mxu0 0.0
          %878 = vmatpush2.msra.mxu0 0.0
          %879 = vmatprep.subr.mxu0 0.0
          %880 = vmatpush2.msra.mxu0 0.0
          %881 = vmatprep.subr.mxu0 0.0
          %882 = vmatpush2.msra.mxu0 0.0
          %883 = vmatprep.subr.mxu0 0.0
          %884 = vmatpush2.msra.mxu0 0.0
          %885 = vmatprep.subr.mxu0 0.0
          %886 = vmatpush2.msra.mxu0 0.0
          %887 = vmatprep.mubr.f32.mxu0 0.0
          %888 = vmatmul.mubr.f32.gmra.mxu0 %v821
          %v889 = vpop.f32.mrf.mxu0
          %v890 = vadd.f32 %v817, %v889
          %v891 = vpop.f32.mrf.mxu0
          %v892 = vadd.f32 %v817, %v891
          %893 = vdwg.mxu0
          %v894 = vmax.f32 %v890, 0.0
          %v895 = vmax.f32 %v892, 0.0
          %898 = vrot.lane.b32.xlu0 %v894, 17
          %v899 = vpop.permute.xlu0 %898
          %900 = vrot.lane.b32.xlu0 %v895, 17
          %v901 = vpop.permute.xlu0 %900
          %v902 = vsel %vm527, %v899, %v901
          %906 = vst.msk [vmem:[#allocation3] sm:$0xff] %vm532, %v899
          %907 = vst [vmem:[#allocation3 + $0x8] sm:$0xff] %v902
          %908 = vst.msk [vmem:[#allocation3 + $0x10] sm:$0xff] %vm527, %v901
          %v909 = vld [vmem:[#allocation3] sm:$0xff]
          %v910 = vld [vmem:[#allocation3 + $0x8] sm:$0xff]
          %v911 = vld [vmem:[%s1] ss:$8 sm:$0x3]
          %v913 = vlaneseq
          %v914 = vshrl.u32 %v913, 7
          %v915 = vsub.s32 0, %v914
          %v916 = vrot.slane %v911, %v915
          %v917 = vlaneseq
          %v918 = vshrl.u32 %v917, 7
          %v919 = vsub.s32 1, %v918
          %v920 = vrot.slane %v911, %v919
          %v923 = vmul.f32 %v909, %v916
          %v924 = vmul.f32 %v910, %v920
          %v925 = vld [vmem:[#allocation3 + $0x10] sm:$0xff]
          %v926 = vld [vmem:[%s553] ss:$8 sm:$0x3]
          %v928 = vlaneseq
          %v929 = vshrl.u32 %v928, 7
          %v930 = vsub.s32 0, %v929
          %v931 = vrot.slane %v926, %v930
          %v932 = vlaneseq
          %v933 = vshrl.u32 %v932, 7
          %v934 = vsub.s32 1, %v933
          %v935 = vrot.slane %v926, %v934
          %936 = vrot.lane.b32.xlu0 %v931, 1
          %v937 = vpop.permute.xlu0 %936
          %938 = vrot.lane.b32.xlu0 %v935, 1
          %v939 = vpop.permute.xlu0 %938
          %v940 = vsel %vm568, %v937, %v939
          %v944 = vmul.f32 %v909, %v937
          %v945 = vmul.f32 %v910, %v940
          %v946 = vmul.f32 %v925, %v939
          %v947 = vld [vmem:[%s576] ss:$8 sm:$0x3]
          %v949 = vlaneseq
          %v950 = vshrl.u32 %v949, 7
          %v951 = vsub.s32 0, %v950
          %v952 = vrot.slane %v947, %v951
          %v953 = vlaneseq
          %v954 = vshrl.u32 %v953, 7
          %v955 = vsub.s32 1, %v954
          %v956 = vrot.slane %v947, %v955
          %957 = vrot.lane.b32.xlu0 %v952, 2
          %v958 = vpop.permute.xlu0 %957
          %959 = vrot.lane.b32.xlu0 %v956, 2
          %v960 = vpop.permute.xlu0 %959
          %v961 = vsel %vm591, %v958, %v960
          %v965 = vmul.f32 %v909, %v958
          %v966 = vmul.f32 %v910, %v961
          %v967 = vmul.f32 %v925, %v960
          %v968 = vld [vmem:[%s599] ss:$8 sm:$0x3]
          %v970 = vlaneseq
          %v971 = vshrl.u32 %v970, 7
          %v972 = vsub.s32 0, %v971
          %v973 = vrot.slane %v968, %v972
          %v974 = vlaneseq
          %v975 = vshrl.u32 %v974, 7
          %v976 = vsub.s32 1, %v975
          %v977 = vrot.slane %v968, %v976
          %978 = vrot.lane.b32.xlu0 %v973, 16
          %v979 = vpop.permute.xlu0 %978
          %980 = vrot.lane.b32.xlu0 %v977, 16
          %v981 = vpop.permute.xlu0 %980
          %v982 = vsel %vm614, %v979, %v981
          %v986 = vmul.f32 %v909, %v979
          %v987 = vmul.f32 %v910, %v982
          %v988 = vmul.f32 %v925, %v981
          %v989 = vld [vmem:[%s622] ss:$8 sm:$0x3]
          %v991 = vlaneseq
          %v992 = vshrl.u32 %v991, 7
          %v993 = vsub.s32 0, %v992
          %v994 = vrot.slane %v989, %v993
          %v995 = vlaneseq
          %v996 = vshrl.u32 %v995, 7
          %v997 = vsub.s32 1, %v996
          %v998 = vrot.slane %v989, %v997
          %999 = vrot.lane.b32.xlu0 %v994, 18
          %v1000 = vpop.permute.xlu0 %999
          %1001 = vrot.lane.b32.xlu0 %v998, 18
          %v1002 = vpop.permute.xlu0 %1001
          %v1003 = vsel %vm637, %v1000, %v1002
          %v1007 = vmul.f32 %v909, %v1000
          %v1008 = vmul.f32 %v910, %v1003
          %v1009 = vmul.f32 %v925, %v1002
          %v1010 = vld [vmem:[%s645] ss:$8 sm:$0x3]
          %v1012 = vlaneseq
          %v1013 = vshrl.u32 %v1012, 7
          %v1014 = vsub.s32 0, %v1013
          %v1015 = vrot.slane %v1010, %v1014
          %v1016 = vlaneseq
          %v1017 = vshrl.u32 %v1016, 7
          %v1018 = vsub.s32 1, %v1017
          %v1019 = vrot.slane %v1010, %v1018
          %1020 = vrot.lane.b32.xlu0 %v1015, 32
          %v1021 = vpop.permute.xlu0 %1020
          %1022 = vrot.lane.b32.xlu0 %v1019, 32
          %v1023 = vpop.permute.xlu0 %1022
          %v1024 = vsel %vm660, %v1021, %v1023
          %v1028 = vmul.f32 %v909, %v1021
          %v1029 = vmul.f32 %v910, %v1024
          %v1030 = vmul.f32 %v925, %v1023
          %v1031 = vld [vmem:[%s668] ss:$8 sm:$0x3]
          %v1033 = vlaneseq
          %v1034 = vshrl.u32 %v1033, 7
          %v1035 = vsub.s32 0, %v1034
          %v1036 = vrot.slane %v1031, %v1035
          %v1037 = vlaneseq
          %v1038 = vshrl.u32 %v1037, 7
          %v1039 = vsub.s32 1, %v1038
          %v1040 = vrot.slane %v1031, %v1039
          %1041 = vrot.lane.b32.xlu0 %v1036, 33
          %v1042 = vpop.permute.xlu0 %1041
          %1043 = vrot.lane.b32.xlu0 %v1040, 33
          %v1044 = vpop.permute.xlu0 %1043
          %v1045 = vsel %vm683, %v1042, %v1044
          %v1049 = vmul.f32 %v909, %v1042
          %v1050 = vmul.f32 %v910, %v1045
          %v1051 = vmul.f32 %v925, %v1044
          %v1052 = vld [vmem:[%s691] ss:$8 sm:$0x3]
          %v1054 = vlaneseq
          %v1055 = vshrl.u32 %v1054, 7
          %v1056 = vsub.s32 0, %v1055
          %v1057 = vrot.slane %v1052, %v1056
          %v1058 = vlaneseq
          %v1059 = vshrl.u32 %v1058, 7
          %v1060 = vsub.s32 1, %v1059
          %v1061 = vrot.slane %v1052, %v1060
          %1062 = vrot.lane.b32.xlu0 %v1057, 34
          %v1063 = vpop.permute.xlu0 %1062
          %1064 = vrot.lane.b32.xlu0 %v1061, 34
          %v1065 = vpop.permute.xlu0 %1064
          %v1066 = vsel %vm706, %v1063, %v1065
          %v1070 = vmul.f32 %v909, %v1063
          %v1071 = vmul.f32 %v910, %v1066
          %v1072 = vmul.f32 %v925, %v1065
          %1076 = vrot.lane.b32.xlu0 %v944, 127
          %v1077 = vpop.permute.xlu0 %1076
          %1078 = vrot.lane.b32.xlu0 %v945, 127
          %v1079 = vpop.permute.xlu0 %1078
          %1080 = vrot.lane.b32.xlu0 %v946, 127
          %v1081 = vpop.permute.xlu0 %1080
          %v1082 = vsel %vm723, %v1077, %v1079
          %v1083 = vsel %vm723, %v1079, %v1081
          %1089 = vrot.lane.b32.xlu0 %v965, 126
          %v1090 = vpop.permute.xlu0 %1089
          %1091 = vrot.lane.b32.xlu0 %v966, 126
          %v1092 = vpop.permute.xlu0 %1091
          %1093 = vrot.lane.b32.xlu0 %v967, 126
          %v1094 = vpop.permute.xlu0 %1093
          %v1095 = vsel %vm737, %v1090, %v1092
          %v1096 = vsel %vm737, %v1092, %v1094
          %1102 = vrot.lane.b32.xlu0 %v986, 112
          %v1103 = vpop.permute.xlu0 %1102
          %1104 = vrot.lane.b32.xlu0 %v987, 112
          %v1105 = vpop.permute.xlu0 %1104
          %1106 = vrot.lane.b32.xlu0 %v988, 112
          %v1107 = vpop.permute.xlu0 %1106
          %v1108 = vsel %vm751, %v1103, %v1105
          %v1109 = vsel %vm751, %v1105, %v1107
          %1115 = vrot.lane.b32.xlu0 %v1007, 110
          %v1116 = vpop.permute.xlu0 %1115
          %1117 = vrot.lane.b32.xlu0 %v1008, 110
          %v1118 = vpop.permute.xlu0 %1117
          %1119 = vrot.lane.b32.xlu0 %v1009, 110
          %v1120 = vpop.permute.xlu0 %1119
          %v1121 = vsel %vm765, %v1116, %v1118
          %v1122 = vsel %vm765, %v1118, %v1120
          %1128 = vrot.lane.b32.xlu0 %v1028, 96
          %v1129 = vpop.permute.xlu0 %1128
          %1130 = vrot.lane.b32.xlu0 %v1029, 96
          %v1131 = vpop.permute.xlu0 %1130
          %1132 = vrot.lane.b32.xlu0 %v1030, 96
          %v1133 = vpop.permute.xlu0 %1132
          %v1134 = vsel %vm779, %v1129, %v1131
          %v1135 = vsel %vm779, %v1131, %v1133
          %1141 = vrot.lane.b32.xlu0 %v1049, 95
          %v1142 = vpop.permute.xlu0 %1141
          %1143 = vrot.lane.b32.xlu0 %v1050, 95
          %v1144 = vpop.permute.xlu0 %1143
          %1145 = vrot.lane.b32.xlu0 %v1051, 95
          %v1146 = vpop.permute.xlu0 %1145
          %v1147 = vsel %vm793, %v1142, %v1144
          %v1148 = vsel %vm793, %v1144, %v1146
          %1154 = vrot.lane.b32.xlu0 %v1070, 94
          %v1155 = vpop.permute.xlu0 %1154
          %1156 = vrot.lane.b32.xlu0 %v1071, 94
          %v1157 = vpop.permute.xlu0 %1156
          %1158 = vrot.lane.b32.xlu0 %v1072, 94
          %v1159 = vpop.permute.xlu0 %1158
          %v1160 = vsel %vm807, %v1155, %v1157
          %v1161 = vsel %vm807, %v1157, %v1159
          %v1164 = vld [vmem:[%s483] sm:$0xff]
          %v1165 = vld [vmem:[%s487] sm:$0xff]
          %1167 = vset.pattern.permute.xlu0 0
          %1168 = vperm.xlu0 %1167, %v1165
          %v1169 = vpop.permute.xlu0 %1168
          %v1172 = vsel %vm819, %v1164, 0
          %1174 = vmatprep.subr.mxu0 0.0
          %1175 = vmatpush1.msra.mxu0 0.0
          %1176 = vmatprep.subr.mxu0 0.0
          %1177 = vmatpush1.msra.mxu0 0.0
          %1178 = vmatprep.subr.mxu0 0.0
          %1179 = vmatpush1.msra.mxu0 0.0
          %1180 = vmatprep.subr.mxu0 0.0
          %1181 = vmatpush1.msra.mxu0 0.0
          %1182 = vmatprep.subr.mxu0 0.0
          %1183 = vmatpush1.msra.mxu0 0.0
          %1184 = vmatprep.subr.mxu0 0.0
          %1185 = vmatpush1.msra.mxu0 0.0
          %1186 = vmatprep.subr.mxu0 0.0
          %1187 = vmatpush1.msra.mxu0 0.0
          %1188 = vmatprep.subr.mxu0 %v1161
          %1189 = vmatpush1.msra.mxu0 %v1160
          %1190 = vmatprep.subr.mxu0 %v1148
          %1191 = vmatpush1.msra.mxu0 %v1147
          %1192 = vmatprep.subr.mxu0 %v1135
          %1193 = vmatpush1.msra.mxu0 %v1134
          %1194 = vmatprep.subr.mxu0 %v1122
          %1195 = vmatpush1.msra.mxu0 %v1121
          %1196 = vmatprep.subr.mxu0 %v895
          %1197 = vmatpush1.msra.mxu0 %v894
          %1198 = vmatprep.subr.mxu0 %v1109
          %1199 = vmatpush1.msra.mxu0 %v1108
          %1200 = vmatprep.subr.mxu0 %v1096
          %1201 = vmatpush1.msra.mxu0 %v1095
          %1202 = vmatprep.subr.mxu0 %v1083
          %1203 = vmatpush1.msra.mxu0 %v1082
          %1204 = vmatprep.subr.mxu0 %v924
          %1205 = vmatpush1.msra.mxu0 %v923
          %1206 = vmatprep.subr.mxu0 0.0
          %1207 = vmatpush2.msra.mxu0 0.0
          %1208 = vmatprep.subr.mxu0 0.0
          %1209 = vmatpush2.msra.mxu0 0.0
          %1210 = vmatprep.subr.mxu0 0.0
          %1211 = vmatpush2.msra.mxu0 0.0
          %1212 = vmatprep.subr.mxu0 0.0
          %1213 = vmatpush2.msra.mxu0 0.0
          %1214 = vmatprep.subr.mxu0 0.0
          %1215 = vmatpush2.msra.mxu0 0.0
          %1216 = vmatprep.subr.mxu0 0.0
          %1217 = vmatpush2.msra.mxu0 0.0
          %1218 = vmatprep.subr.mxu0 0.0
          %1219 = vmatpush2.msra.mxu0 0.0
          %1220 = vmatprep.subr.mxu0 0.0
          %1221 = vmatpush2.msra.mxu0 0.0
          %1222 = vmatprep.subr.mxu0 0.0
          %1223 = vmatpush2.msra.mxu0 0.0
          %1224 = vmatprep.subr.mxu0 0.0
          %1225 = vmatpush2.msra.mxu0 0.0
          %1226 = vmatprep.subr.mxu0 0.0
          %1227 = vmatpush2.msra.mxu0 0.0
          %1228 = vmatprep.subr.mxu0 0.0
          %1229 = vmatpush2.msra.mxu0 0.0
          %1230 = vmatprep.subr.mxu0 0.0
          %1231 = vmatpush2.msra.mxu0 0.0
          %1232 = vmatprep.subr.mxu0 0.0
          %1233 = vmatpush2.msra.mxu0 0.0
          %1234 = vmatprep.subr.mxu0 0.0
          %1235 = vmatpush2.msra.mxu0 0.0
          %1236 = vmatprep.subr.mxu0 0.0
          %1237 = vmatpush2.msra.mxu0 0.0
          %1238 = vmatprep.mubr.f32.mxu0 0.0
          %1239 = vmatmul.mubr.f32.gmra.mxu0 %v1172
          %v1240 = vpop.f32.mrf.mxu0
          %v1241 = vadd.f32 %v1169, %v1240
          %v1242 = vpop.f32.mrf.mxu0
          %v1243 = vadd.f32 %v1169, %v1242
          %1244 = vdwg.mxu0
          %v1245 = vadd.f32 %v1241, %v1243
          %1246 = vadd.xlane.f32.xlu0 %v1245
          %v1247 = vpop.xlane.xlu0 %1246
          %v1248 = vrcp.pop 256.0
          %v1249 = vmul.f32 %v1247, %v1248
          %v1250 = vld [vmem:[%s491] sm:$0xff]
          %v1251 = vmul.f32 %v1250, %v1249
          %v1252 = vsel %vm591, %v1251, 0.0
          %v1253 = vrot.slane %v1252, 4
          %v1254 = vadd.f32 %v1252, %v1253
          %v1255 = vrot.slane %v1254, 2
          %v1256 = vadd.f32 %v1254, %v1255
          %v1257 = vrot.slane %v1256, 1
          %v1258 = vadd.f32 %v1256, %v1257
          %v1259 = vld [vmem:[%s494] sm:$0x1]
          %v1260 = vadd.f32 %v1258, %v1259
          %v1261 = vmax.f32 %v1260, 0.0
          %v1262 = vld [vmem:[%s498] sm:$0xff]
          %v1263 = vlaneseq
          %v1264 = vshrl.u32 %v1263, 7
          %v1265 = vsub.s32 0, %v1264
          %v1266 = vrot.slane %v1261, %v1265
          %v1267 = vmul.f32 %v1262, %v1266
          %v1268 = vsel %vm591, %v1267, 0.0
          %1269 = vadd.xlane.f32.xlu0 %v1268
          %v1270 = vpop.xlane.xlu0 %1269
          %v1271 = vld [vmem:[%s502] sm:$0xff]
          %v1272 = vadd.f32 %v1270, %v1271
          %v1273 = vxor.u32 %v1272, 2147483648
          %v1274 = vmul.f32 %v1273, 1.442695
          %v1275 = vpow.pop %v1274
          %v1276 = vadd.f32 %v1275, 1.0
          %v1277 = vrcp.pop %v1276
          %v1278 = vmul.f32 1.0, %v1277
          %1280 = vset.pattern.permute.xlu0 0
          %1281 = vperm.xlu0 %1280, %v1278
          %v1282 = vpop.permute.xlu0 %1281
          %v1284 = vmul.f32 %v1241, %v1282
          %v1285 = vmul.f32 %v1243, %v1282
          %v1286 = vadd.f32 %v1284, %v519
          %v1287 = vadd.f32 %v1285, %v520
          %1288 = vst [vmem:[#allocation2] sm:$0xff] %v1286
          %1289 = vst [vmem:[#allocation2 + $0x8] sm:$0xff] %v1287
        $region68: #{tpu_custom_call.1} parent=59 // pred_fallthru
          _
        %p1290 = scmp.eq.s32.totalorder %s29, 2
        // Predicated region
        $region69: #{tpu_custom_call.1} parent=59 // pred_check
          %p1291 = pneg %p1290
        $region70: #{tpu_custom_call.1} parent=59 // pred_check_branch
          %1293 = sbr.rel (%p1291) target = $region72
        $region71: #{tpu_custom_call.1} parent=59 // pred_region
          %v1294 = vld [vmem:[#allocation2] sm:$0xff]
          %v1295 = vld [vmem:[#allocation2 + $0x8] sm:$0xff]
          %1298 = vrot.lane.b32.xlu0 %v1294, 17
          %v1299 = vpop.permute.xlu0 %1298
          %1300 = vrot.lane.b32.xlu0 %v1295, 17
          %v1301 = vpop.permute.xlu0 %1300
          %vm1302 = vcmask 138240
          %v1303 = vsel %vm1302, %v1299, %v1301
          %vm1307 = vcmask 1047688
          %1308 = vst.msk [vmem:[#allocation3] sm:$0xff] %vm1307, %v1299
          %1309 = vst [vmem:[#allocation3 + $0x8] sm:$0xff] %v1303
          %1310 = vst.msk [vmem:[#allocation3 + $0x10] sm:$0xff] %vm1302, %v1301
          %v1311 = vld [vmem:[#allocation3] sm:$0xff]
          %v1312 = vld [vmem:[#allocation3 + $0x8] sm:$0xff]
          %v1313 = vld [vmem:[%s1] ss:$8 sm:$0x3]
          %v1315 = vlaneseq
          %v1316 = vshrl.u32 %v1315, 7
          %v1317 = vsub.s32 0, %v1316
          %v1318 = vrot.slane %v1313, %v1317
          %v1319 = vlaneseq
          %v1320 = vshrl.u32 %v1319, 7
          %v1321 = vsub.s32 1, %v1320
          %v1322 = vrot.slane %v1313, %v1321
          %v1325 = vmul.f32 %v1311, %v1318
          %v1326 = vmul.f32 %v1312, %v1322
          %v1327 = vld [vmem:[#allocation3 + $0x10] sm:$0xff]
          %s1328 = scalar_lea.vmem %s1, 1
          %v1329 = vld [vmem:[%s1328] ss:$8 sm:$0x3]
          %v1331 = vlaneseq
          %v1332 = vshrl.u32 %v1331, 7
          %v1333 = vsub.s32 0, %v1332
          %v1334 = vrot.slane %v1329, %v1333
          %v1335 = vlaneseq
          %v1336 = vshrl.u32 %v1335, 7
          %v1337 = vsub.s32 1, %v1336
          %v1338 = vrot.slane %v1329, %v1337
          %1339 = vrot.lane.b32.xlu0 %v1334, 1
          %v1340 = vpop.permute.xlu0 %1339
          %1341 = vrot.lane.b32.xlu0 %v1338, 1
          %v1342 = vpop.permute.xlu0 %1341
          %vm1343 = vcmask 7168
          %v1344 = vsel %vm1343, %v1340, %v1342
          %v1348 = vmul.f32 %v1311, %v1340
          %v1349 = vmul.f32 %v1312, %v1344
          %v1350 = vmul.f32 %v1327, %v1342
          %s1351 = scalar_lea.vmem %s1, 2
          %v1352 = vld [vmem:[%s1351] ss:$8 sm:$0x3]
          %v1354 = vlaneseq
          %v1355 = vshrl.u32 %v1354, 7
          %v1356 = vsub.s32 0, %v1355
          %v1357 = vrot.slane %v1352, %v1356
          %v1358 = vlaneseq
          %v1359 = vshrl.u32 %v1358, 7
          %v1360 = vsub.s32 1, %v1359
          %v1361 = vrot.slane %v1352, %v1360
          %1362 = vrot.lane.b32.xlu0 %v1357, 2
          %v1363 = vpop.permute.xlu0 %1362
          %1364 = vrot.lane.b32.xlu0 %v1361, 2
          %v1365 = vpop.permute.xlu0 %1364
          %vm1366 = vcmask 15360
          %v1367 = vsel %vm1366, %v1363, %v1365
          %v1371 = vmul.f32 %v1311, %v1363
          %v1372 = vmul.f32 %v1312, %v1367
          %v1373 = vmul.f32 %v1327, %v1365
          %s1374 = scalar_lea.vmem %s1, 3
          %v1375 = vld [vmem:[%s1374] ss:$8 sm:$0x3]
          %v1377 = vlaneseq
          %v1378 = vshrl.u32 %v1377, 7
          %v1379 = vsub.s32 0, %v1378
          %v1380 = vrot.slane %v1375, %v1379
          %v1381 = vlaneseq
          %v1382 = vshrl.u32 %v1381, 7
          %v1383 = vsub.s32 1, %v1382
          %v1384 = vrot.slane %v1375, %v1383
          %1385 = vrot.lane.b32.xlu0 %v1380, 16
          %v1386 = vpop.permute.xlu0 %1385
          %1387 = vrot.lane.b32.xlu0 %v1384, 16
          %v1388 = vpop.permute.xlu0 %1387
          %vm1389 = vcmask 130048
          %v1390 = vsel %vm1389, %v1386, %v1388
          %v1394 = vmul.f32 %v1311, %v1386
          %v1395 = vmul.f32 %v1312, %v1390
          %v1396 = vmul.f32 %v1327, %v1388
          %s1397 = scalar_lea.vmem %s1, 5
          %v1398 = vld [vmem:[%s1397] ss:$8 sm:$0x3]
          %v1400 = vlaneseq
          %v1401 = vshrl.u32 %v1400, 7
          %v1402 = vsub.s32 0, %v1401
          %v1403 = vrot.slane %v1398, %v1402
          %v1404 = vlaneseq
          %v1405 = vshrl.u32 %v1404, 7
          %v1406 = vsub.s32 1, %v1405
          %v1407 = vrot.slane %v1398, %v1406
          %1408 = vrot.lane.b32.xlu0 %v1403, 18
          %v1409 = vpop.permute.xlu0 %1408
          %1410 = vrot.lane.b32.xlu0 %v1407, 18
          %v1411 = vpop.permute.xlu0 %1410
          %vm1412 = vcmask 146432
          %v1413 = vsel %vm1412, %v1409, %v1411
          %v1417 = vmul.f32 %v1311, %v1409
          %v1418 = vmul.f32 %v1312, %v1413
          %v1419 = vmul.f32 %v1327, %v1411
          %s1420 = scalar_lea.vmem %s1, 6
          %v1421 = vld [vmem:[%s1420] ss:$8 sm:$0x3]
          %v1423 = vlaneseq
          %v1424 = vshrl.u32 %v1423, 7
          %v1425 = vsub.s32 0, %v1424
          %v1426 = vrot.slane %v1421, %v1425
          %v1427 = vlaneseq
          %v1428 = vshrl.u32 %v1427, 7
          %v1429 = vsub.s32 1, %v1428
          %v1430 = vrot.slane %v1421, %v1429
          %1431 = vrot.lane.b32.xlu0 %v1426, 32
          %v1432 = vpop.permute.xlu0 %1431
          %1433 = vrot.lane.b32.xlu0 %v1430, 32
          %v1434 = vpop.permute.xlu0 %1433
          %vm1435 = vcmask 261120
          %v1436 = vsel %vm1435, %v1432, %v1434
          %v1440 = vmul.f32 %v1311, %v1432
          %v1441 = vmul.f32 %v1312, %v1436
          %v1442 = vmul.f32 %v1327, %v1434
          %s1443 = scalar_lea.vmem %s1, 7
          %v1444 = vld [vmem:[%s1443] ss:$8 sm:$0x3]
          %v1446 = vlaneseq
          %v1447 = vshrl.u32 %v1446, 7
          %v1448 = vsub.s32 0, %v1447
          %v1449 = vrot.slane %v1444, %v1448
          %v1450 = vlaneseq
          %v1451 = vshrl.u32 %v1450, 7
          %v1452 = vsub.s32 1, %v1451
          %v1453 = vrot.slane %v1444, %v1452
          %1454 = vrot.lane.b32.xlu0 %v1449, 33
          %v1455 = vpop.permute.xlu0 %1454
          %1456 = vrot.lane.b32.xlu0 %v1453, 33
          %v1457 = vpop.permute.xlu0 %1456
          %vm1458 = vcmask 269312
          %v1459 = vsel %vm1458, %v1455, %v1457
          %v1463 = vmul.f32 %v1311, %v1455
          %v1464 = vmul.f32 %v1312, %v1459
          %v1465 = vmul.f32 %v1327, %v1457
          %s1466 = scalar_lea.vmem %s1, 16
          %v1467 = vld [vmem:[%s1466] ss:$8 sm:$0x3]
          %v1469 = vlaneseq
          %v1470 = vshrl.u32 %v1469, 7
          %v1471 = vsub.s32 0, %v1470
          %v1472 = vrot.slane %v1467, %v1471
          %v1473 = vlaneseq
          %v1474 = vshrl.u32 %v1473, 7
          %v1475 = vsub.s32 1, %v1474
          %v1476 = vrot.slane %v1467, %v1475
          %1477 = vrot.lane.b32.xlu0 %v1472, 34
          %v1478 = vpop.permute.xlu0 %1477
          %1479 = vrot.lane.b32.xlu0 %v1476, 34
          %v1480 = vpop.permute.xlu0 %1479
          %vm1481 = vcmask 277504
          %v1482 = vsel %vm1481, %v1478, %v1480
          %v1486 = vmul.f32 %v1311, %v1478
          %v1487 = vmul.f32 %v1312, %v1482
          %v1488 = vmul.f32 %v1327, %v1480
          %1492 = vrot.lane.b32.xlu0 %v1348, 127
          %v1493 = vpop.permute.xlu0 %1492
          %1494 = vrot.lane.b32.xlu0 %v1349, 127
          %v1495 = vpop.permute.xlu0 %1494
          %1496 = vrot.lane.b32.xlu0 %v1350, 127
          %v1497 = vpop.permute.xlu0 %1496
          %vm1498 = vcmask 1039360
          %v1499 = vsel %vm1498, %v1493, %v1495
          %v1500 = vsel %vm1498, %v1495, %v1497
          %1506 = vrot.lane.b32.xlu0 %v1371, 126
          %v1507 = vpop.permute.xlu0 %1506
          %1508 = vrot.lane.b32.xlu0 %v1372, 126
          %v1509 = vpop.permute.xlu0 %1508
          %1510 = vrot.lane.b32.xlu0 %v1373, 126
          %v1511 = vpop.permute.xlu0 %1510
          %vm1512 = vcmask 1031168
          %v1513 = vsel %vm1512, %v1507, %v1509
          %v1514 = vsel %vm1512, %v1509, %v1511
          %1520 = vrot.lane.b32.xlu0 %v1394, 112
          %v1521 = vpop.permute.xlu0 %1520
          %1522 = vrot.lane.b32.xlu0 %v1395, 112
          %v1523 = vpop.permute.xlu0 %1522
          %1524 = vrot.lane.b32.xlu0 %v1396, 112
          %v1525 = vpop.permute.xlu0 %1524
          %vm1526 = vcmask 916480
          %v1527 = vsel %vm1526, %v1521, %v1523
          %v1528 = vsel %vm1526, %v1523, %v1525
          %1534 = vrot.lane.b32.xlu0 %v1417, 110
          %v1535 = vpop.permute.xlu0 %1534
          %1536 = vrot.lane.b32.xlu0 %v1418, 110
          %v1537 = vpop.permute.xlu0 %1536
          %1538 = vrot.lane.b32.xlu0 %v1419, 110
          %v1539 = vpop.permute.xlu0 %1538
          %vm1540 = vcmask 900096
          %v1541 = vsel %vm1540, %v1535, %v1537
          %v1542 = vsel %vm1540, %v1537, %v1539
          %1548 = vrot.lane.b32.xlu0 %v1440, 96
          %v1549 = vpop.permute.xlu0 %1548
          %1550 = vrot.lane.b32.xlu0 %v1441, 96
          %v1551 = vpop.permute.xlu0 %1550
          %1552 = vrot.lane.b32.xlu0 %v1442, 96
          %v1553 = vpop.permute.xlu0 %1552
          %vm1554 = vcmask 785408
          %v1555 = vsel %vm1554, %v1549, %v1551
          %v1556 = vsel %vm1554, %v1551, %v1553
          %1562 = vrot.lane.b32.xlu0 %v1463, 95
          %v1563 = vpop.permute.xlu0 %1562
          %1564 = vrot.lane.b32.xlu0 %v1464, 95
          %v1565 = vpop.permute.xlu0 %1564
          %1566 = vrot.lane.b32.xlu0 %v1465, 95
          %v1567 = vpop.permute.xlu0 %1566
          %vm1568 = vcmask 777216
          %v1569 = vsel %vm1568, %v1563, %v1565
          %v1570 = vsel %vm1568, %v1565, %v1567
          %1576 = vrot.lane.b32.xlu0 %v1486, 94
          %v1577 = vpop.permute.xlu0 %1576
          %1578 = vrot.lane.b32.xlu0 %v1487, 94
          %v1579 = vpop.permute.xlu0 %1578
          %1580 = vrot.lane.b32.xlu0 %v1488, 94
          %v1581 = vpop.permute.xlu0 %1580
          %vm1582 = vcmask 769024
          %v1583 = vsel %vm1582, %v1577, %v1579
          %v1584 = vsel %vm1582, %v1579, %v1581
          %v1587 = vld [vmem:[%s475] sm:$0xff]
          %v1588 = vld [vmem:[%s479] sm:$0xff]
          %1590 = vset.pattern.permute.xlu0 0
          %1591 = vperm.xlu0 %1590, %v1588
          %v1592 = vpop.permute.xlu0 %1591
          %vm1594 = vcmask 588800
          %v1596 = vsel %vm1594, %v1587, 0
          %1598 = vmatprep.subr.mxu0 0.0
          %1599 = vmatpush1.msra.mxu0 0.0
          %1600 = vmatprep.subr.mxu0 0.0
          %1601 = vmatpush1.msra.mxu0 0.0
          %1602 = vmatprep.subr.mxu0 0.0
          %1603 = vmatpush1.msra.mxu0 0.0
          %1604 = vmatprep.subr.mxu0 0.0
          %1605 = vmatpush1.msra.mxu0 0.0
          %1606 = vmatprep.subr.mxu0 0.0
          %1607 = vmatpush1.msra.mxu0 0.0
          %1608 = vmatprep.subr.mxu0 0.0
          %1609 = vmatpush1.msra.mxu0 0.0
          %1610 = vmatprep.subr.mxu0 0.0
          %1611 = vmatpush1.msra.mxu0 0.0
          %1612 = vmatprep.subr.mxu0 %v1584
          %1613 = vmatpush1.msra.mxu0 %v1583
          %1614 = vmatprep.subr.mxu0 %v1570
          %1615 = vmatpush1.msra.mxu0 %v1569
          %1616 = vmatprep.subr.mxu0 %v1556
          %1617 = vmatpush1.msra.mxu0 %v1555
          %1618 = vmatprep.subr.mxu0 %v1542
          %1619 = vmatpush1.msra.mxu0 %v1541
          %1620 = vmatprep.subr.mxu0 %v1295
          %1621 = vmatpush1.msra.mxu0 %v1294
          %1622 = vmatprep.subr.mxu0 %v1528
          %1623 = vmatpush1.msra.mxu0 %v1527
          %1624 = vmatprep.subr.mxu0 %v1514
          %1625 = vmatpush1.msra.mxu0 %v1513
          %1626 = vmatprep.subr.mxu0 %v1500
          %1627 = vmatpush1.msra.mxu0 %v1499
          %1628 = vmatprep.subr.mxu0 %v1326
          %1629 = vmatpush1.msra.mxu0 %v1325
          %1630 = vmatprep.subr.mxu0 0.0
          %1631 = vmatpush2.msra.mxu0 0.0
          %1632 = vmatprep.subr.mxu0 0.0
          %1633 = vmatpush2.msra.mxu0 0.0
          %1634 = vmatprep.subr.mxu0 0.0
          %1635 = vmatpush2.msra.mxu0 0.0
          %1636 = vmatprep.subr.mxu0 0.0
          %1637 = vmatpush2.msra.mxu0 0.0
          %1638 = vmatprep.subr.mxu0 0.0
          %1639 = vmatpush2.msra.mxu0 0.0
          %1640 = vmatprep.subr.mxu0 0.0
          %1641 = vmatpush2.msra.mxu0 0.0
          %1642 = vmatprep.subr.mxu0 0.0
          %1643 = vmatpush2.msra.mxu0 0.0
          %1644 = vmatprep.subr.mxu0 0.0
          %1645 = vmatpush2.msra.mxu0 0.0
          %1646 = vmatprep.subr.mxu0 0.0
          %1647 = vmatpush2.msra.mxu0 0.0
          %1648 = vmatprep.subr.mxu0 0.0
          %1649 = vmatpush2.msra.mxu0 0.0
          %1650 = vmatprep.subr.mxu0 0.0
          %1651 = vmatpush2.msra.mxu0 0.0
          %1652 = vmatprep.subr.mxu0 0.0
          %1653 = vmatpush2.msra.mxu0 0.0
          %1654 = vmatprep.subr.mxu0 0.0
          %1655 = vmatpush2.msra.mxu0 0.0
          %1656 = vmatprep.subr.mxu0 0.0
          %1657 = vmatpush2.msra.mxu0 0.0
          %1658 = vmatprep.subr.mxu0 0.0
          %1659 = vmatpush2.msra.mxu0 0.0
          %1660 = vmatprep.subr.mxu0 0.0
          %1661 = vmatpush2.msra.mxu0 0.0
          %1662 = vmatprep.mubr.f32.mxu0 0.0
          %1663 = vmatmul.mubr.f32.gmra.mxu0 %v1596
          %v1664 = vpop.f32.mrf.mxu0
          %v1665 = vadd.f32 %v1592, %v1664
          %v1666 = vpop.f32.mrf.mxu0
          %v1667 = vadd.f32 %v1592, %v1666
          %1668 = vdwg.mxu0
          %v1669 = vld [vmem:[%s471] sm:$0xff]
          %v1670 = vld [vmem:[%s471 + $0x8] sm:$0xff]
          %v1671 = vadd.f32 %v1665, %v1669
          %v1672 = vadd.f32 %v1667, %v1670
          %1673 = vst [vmem:[%s466] sm:$0xff] %v1671
          %1674 = vst [vmem:[%s466 + $0x8] sm:$0xff] %v1672
        $region72: #{tpu_custom_call.1} parent=59 // pred_fallthru
          _
        %s1675 = sand.u32 %s299, 1
        %s1676 = scalar_lea.sflag [#allocation5], %s1675
        %s1677 = sand.u32 %s299, 1
        %s1678 = smul.addr %s1677, 16
        %s1679 = scalar_lea.vmem [#allocation4], %s1678
        // Predicated region
        $region73: #{tpu_custom_call.1} parent=59 // pred_check
          %p1680 = pneg %p309
        $region74: #{tpu_custom_call.1} parent=59 // pred_check_branch
          %1682 = sbr.rel (%p1680) target = $region76
        $region75: #{tpu_custom_call.1} parent=59 // pred_region
          %s1684 = ssub.s32 256, 256
          %1685 = vsyncadd %s1676, %s1684
          %s1686 = smul.addr %s28, 2
          %s1687 = smul.addr %s1686, 128
          %s1688 = scalar_lea.hbm %s10, %s1687
          %s1690 = sshll.u32 %s1679, 4
          %s1691 = int_to_ptr.vmem [resolvable:$true] %s1690
          %1693 = dma.vmem_to_hbm [thread:$0]  %s1691, 256, %s1688, %s1676
        $region76: #{tpu_custom_call.1} parent=59 // pred_fallthru
          _
      $region60: #{tpu_custom_call.1} parent=5 // pred_fallthru
        _
      %p1694 = scmp.le.s32.totalorder 2, %s19
      // Predicated region
      $region77: #{tpu_custom_call.1} parent=5 // pred_check
        %p1695 = pneg %p1694
      $region78: #{tpu_custom_call.1} parent=5 // pred_check_branch
        %1697 = sbr.rel (%p1695) target = $region80
      $region79: #{tpu_custom_call.1} parent=5 // pred_region
        %s1698 = ssub.s32 %s19, 2
        // Predicated region
        $region81: #{tpu_custom_call.1} parent=79 // pred_check
          %p1699 = pneg %p315
        $region82: #{tpu_custom_call.1} parent=79 // pred_check_branch
          %1701 = sbr.rel (%p1699) target = $region84
        $region83: #{tpu_custom_call.1} parent=79 // pred_region
          %s1702 = sand.u32 %s300, 1
          %s1703 = scalar_lea.sflag [#allocation5], %s1702
          %s1704 = sand.u32 %s300, 1
          %s1705 = smul.addr %s1704, 16
          %s1706 = scalar_lea.vmem [#allocation4], %s1705
          %1707 = dma.done %s1703, 256
        $region84: #{tpu_custom_call.1} parent=79 // pred_fallthru
          _
      $region80: #{tpu_custom_call.1} parent=5 // pred_fallthru
        _
    $region6: #{tpu_custom_call.1} parent=1 // loop_footer
      %s23 = sadd.s32 1, %s19
    $region7: #{tpu_custom_call.1} parent=1 // loop_footer_branch
      %18 = sbr.rel target = $region3
    $region8: #{tpu_custom_call.1} parent=1 // loop_exit
      _
    %1708 = vsyncpa [#allocation5], 1
    %s1709 = scalar_lea.sflag [#allocation5], 1
    %1710 = vsyncpa %s1709, 1

</llo_original>
